<compile_context>
chip_gen: v5e
topology: v5e:2x2
jax: 0.10.0
libtpu: 0.0.40
codegen_flags: <defaults>
</compile_context>

<pallas_src>
import functools
import math

import jax
import jax.numpy as jnp
from jax.experimental import pallas as pl
from jax.experimental.pallas import tpu as pltpu


# ----------------------------------------------------------------------------
# Fused per-example encoder + classification-head kernel
# ----------------------------------------------------------------------------
def _encoder_kernel(
    # per-example inputs (constant across the layer axis)
    emb_ref,                 # (1, S, H)  summed embeddings for this example
    mask_ref,                # (1, 1, S)  additive key mask (0 keep / -1e9 drop)
    embln_ref,               # (2, H)     embedding LayerNorm gamma/beta
    # per-layer weight slabs (streamed along the layer grid axis)
    wqkv_ref,                # (1, 3nH, H, dH)  bf16, scale folded into wq
    bqkv_ref,                # (1, 3nH, 1, dH)  f32,  scale folded into bq
    wo_ref,                  # (1, nH, dH, H)   bf16
    vec_ref,                 # (1, 6, H)  f32: rows = bo, ln1_g, ln1_b, bd, ln2_g, ln2_b
    wi_ref,                  # (1, H, I)  bf16
    bi_ref,                  # (1, 1, I)  f32
    wd_ref,                  # (1, I, H)  bf16
    # classification head (grid-constant)
    fc1w_ref, fc1b_ref,      # (H, 128) bf16, (1, 128) f32
    fc2w_ref, fc2b_ref,      # (128, 128) bf16 (lane-padded), (1, 128) f32 (lane-padded)
    # output
    out_ref,                 # (1, 1, 128) logits row, written on the last layer only
    # scratch
    h_scr,                   # (S, H) f32 VMEM-resident activation carry
    *, eps):

    layer = pl.program_id(1)
    n_layers = pl.num_programs(1)
    n3 = wqkv_ref.shape[1]               # 3 * n_heads
    n_heads = n3 // 3

    def layernorm(x, g, b):
        mu = jnp.mean(x, axis=-1, keepdims=True)
        c = x - mu
        var = jnp.mean(c * c, axis=-1, keepdims=True)
        return c * jax.lax.rsqrt(var + eps) * g + b

    # ---- layer 0: embedding LayerNorm ---------------------------------------
    @pl.when(layer == 0)
    def _():
        h_scr[...] = layernorm(emb_ref[0], embln_ref[0:1, :], embln_ref[1:2, :])

    h = h_scr[...]                                    # (S, H) f32
    S, H = h.shape
    hb = h.astype(jnp.bfloat16)

    # ---- self-attention: head axis leading, no lane-dim slicing -------------
    hb3 = jnp.broadcast_to(hb, (n3, S, H))
    qkv = jax.lax.dot_general(                        # (3nH, S, dH), f32 accumulate
        hb3, wqkv_ref[0],
        dimension_numbers=(((2,), (1,)), ((0,), (0,))),
        preferred_element_type=jnp.float32)
    qkv = qkv + bqkv_ref[0]                           # (3nH, 1, dH) bias
    q = qkv[:n_heads]                                 # (nH, S, dH)  leading-dim slices
    k = qkv[n_heads:2 * n_heads]
    v = qkv[2 * n_heads:]

    s = jax.lax.dot_general(                          # (nH, S, S)
        q.astype(jnp.bfloat16), k.astype(jnp.bfloat16),
        dimension_numbers=(((2,), (2,)), ((0,), (0,))),
        preferred_element_type=jnp.float32)
    s = s + mask_ref[...]                             # additive key mask, per example
    s = s - jnp.max(s, axis=-1, keepdims=True)
    p = jnp.exp(s)
    p = p * pl.reciprocal(jnp.sum(p, axis=-1, keepdims=True), approx=True)

    ctx = jax.lax.dot_general(                        # (nH, S, dH)
        p.astype(jnp.bfloat16), v.astype(jnp.bfloat16),
        dimension_numbers=(((2,), (1,)), ((0,), (0,))),
        preferred_element_type=jnp.float32)

    attn_h = jax.lax.dot_general(                     # (nH, S, H): per-head output proj
        ctx.astype(jnp.bfloat16), wo_ref[0],
        dimension_numbers=(((2,), (1,)), ((0,), (0,))),
        preferred_element_type=jnp.float32)
    vec = vec_ref[0]                                  # (6, H)
    attn = jnp.sum(attn_h, axis=0) + vec[0:1, :]      # sum over heads + bo
    h1 = layernorm(attn + h, vec[1:2, :], vec[2:3, :])

    # ---- feed-forward --------------------------------------------------------
    inter = jnp.dot(h1.astype(jnp.bfloat16), wi_ref[0],
                    preferred_element_type=jnp.float32) + bi_ref[0]
    # TODO(synk): tanh-approx GELU (jax.nn.gelu default); HF BERT uses exact erf GELU.
    inter = jax.nn.gelu(inter)
    ffn = jnp.dot(inter.astype(jnp.bfloat16), wd_ref[0],
                  preferred_element_type=jnp.float32) + vec[3:4, :]
    h2 = layernorm(ffn + h1, vec[4:5, :], vec[5:6, :])
    h_scr[...] = h2                                   # carry to next layer

    # ---- last layer: fc2(relu(fc1(h[:, 0, :]))) ------------------------------
    @pl.when(layer == n_layers - 1)
    def _():
        cls = h2[0:1, :]                              # [CLS] row of this example
        t = jnp.dot(cls.astype(jnp.bfloat16), fc1w_ref[...],
                    preferred_element_type=jnp.float32) + fc1b_ref[...]
        t = jnp.maximum(t, 0.0)
        logits = (jnp.dot(t.astype(jnp.bfloat16), fc2w_ref[...],
                          preferred_element_type=jnp.float32) + fc2b_ref[...])
        out_ref[0] = logits.astype(out_ref.dtype)     # lane-dense (1, 128) row


# ----------------------------------------------------------------------------
# Model (glue + single fused kernel)
# ----------------------------------------------------------------------------
CFG = dict(
    vocab_size=100,
    type_vocab_size=2,
    max_position=16,
    hidden=32,
    heads=2,
    layers=2,
    intermediate=64,
    output_num=4,
)


def init_params(key, cfg):
    """Deterministic synthetic parameters (no pretrained checkpoint)."""
    H, I = cfg["hidden"], cfg["intermediate"]

    def nxt():
        nonlocal key
        key, sub = jax.random.split(key)
        return sub

    def dense(din, dout):
        return jax.random.normal(nxt(), (din, dout), jnp.float32) * 0.02

    p = {
        "word_emb": jax.random.normal(nxt(), (cfg["vocab_size"], H), jnp.float32) * 0.02,
        "pos_emb": jax.random.normal(nxt(), (cfg["max_position"], H), jnp.float32) * 0.02,
        "type_emb": jax.random.normal(nxt(), (cfg["type_vocab_size"], H), jnp.float32) * 0.02,
        "emb_ln_g": jnp.ones((H,), jnp.float32),
        "emb_ln_b": jnp.zeros((H,), jnp.float32),
        "layers": [],
        "fc1_w": dense(H, 128),
        "fc1_b": jnp.zeros((128,), jnp.float32),
        "fc2_w": dense(128, cfg["output_num"]),
        "fc2_b": jnp.zeros((cfg["output_num"],), jnp.float32),
    }
    for _ in range(cfg["layers"]):
        p["layers"].append({
            "wq": dense(H, H), "bq": jnp.zeros((H,), jnp.float32),
            "wk": dense(H, H), "bk": jnp.zeros((H,), jnp.float32),
            "wv": dense(H, H), "bv": jnp.zeros((H,), jnp.float32),
            "wo": dense(H, H), "bo": jnp.zeros((H,), jnp.float32),
            "ln1_g": jnp.ones((H,), jnp.float32), "ln1_b": jnp.zeros((H,), jnp.float32),
            "wi": dense(H, I), "bi": jnp.zeros((I,), jnp.float32),
            "wd": dense(I, H), "bd": jnp.zeros((H,), jnp.float32),
            "ln2_g": jnp.ones((H,), jnp.float32), "ln2_b": jnp.zeros((H,), jnp.float32),
        })
    return p


def bert_classification_forward(params, input_ids, token_type_ids, attention_mask, cfg):
    B, S = input_ids.shape
    H, nH = cfg["hidden"], cfg["heads"]
    I, L, O = cfg["intermediate"], cfg["layers"], cfg["output_num"]
    dH = H // nH
    scale = 1.0 / math.sqrt(dH)
    OP = 128                                   # lane-dense padded classifier width

    # ---- embeddings (data-dependent gather stays in plain JAX glue) ----------
    # TODO(synk): embedding-table gather not expressed as a Pallas kernel.
    emb = (params["word_emb"][input_ids]
           + params["pos_emb"][jnp.arange(S)][None, :, :]
           + params["type_emb"][token_type_ids]).astype(jnp.float32)        # (B,S,H)

    # per-example additive key mask: 0 keep / -1e9 drop                      (B,1,S)
    mask_bias = ((attention_mask.astype(jnp.float32) - 1.0) * 1e9).reshape(B, 1, S)

    embln = jnp.stack([params["emb_ln_g"], params["emb_ln_b"]])             # (2, H)

    Ls = params["layers"]

    def hsplit(w):                          # (H, H) -> (nH, H, dH), head leading
        return w.reshape(H, nH, dH).transpose(1, 0, 2)

    # fused QKV weights, head axis leading; 1/sqrt(dH) folded into wq/bq
    wqkv = jnp.stack([jnp.concatenate(
        [hsplit(p["wq"] * scale), hsplit(p["wk"]), hsplit(p["wv"])], axis=0)
        for p in Ls]).astype(jnp.bfloat16)                                  # (L,3nH,H,dH)
    bqkv = jnp.stack([jnp.concatenate(
        [(p["bq"] * scale).reshape(nH, 1, dH),
         p["bk"].reshape(nH, 1, dH),
         p["bv"].reshape(nH, 1, dH)], axis=0)
        for p in Ls])                                                        # (L,3nH,1,dH)
    wo = jnp.stack([p["wo"].reshape(nH, dH, H) for p in Ls]).astype(jnp.bfloat16)
    vec6 = jnp.stack([jnp.stack([p["bo"], p["ln1_g"], p["ln1_b"],
                                 p["bd"], p["ln2_g"], p["ln2_b"]])
                      for p in Ls])                                          # (L,6,H)
    wi = jnp.stack([p["wi"] for p in Ls]).astype(jnp.bfloat16)               # (L,H,I)
    bi = jnp.stack([p["bi"][None, :] for p in Ls])                           # (L,1,I)
    wd = jnp.stack([p["wd"] for p in Ls]).astype(jnp.bfloat16)               # (L,I,H)

    fc1w = params["fc1_w"].astype(jnp.bfloat16)                              # (H,128)
    fc1b = params["fc1_b"].reshape(1, 128)
    fc2w = jnp.zeros((128, OP), jnp.float32).at[:, :O].set(
        params["fc2_w"]).astype(jnp.bfloat16)                                # (128,128)
    fc2b = jnp.zeros((1, OP), jnp.float32).at[0, :O].set(params["fc2_b"])    # (1,128)

    kern = functools.partial(_encoder_kernel, eps=1e-12)

    def const_spec(shape):                  # grid-constant block
        return pl.BlockSpec(shape, lambda b, l: (0, 0))

    out = pl.pallas_call(
        kern,
        out_shape=jax.ShapeDtypeStruct((B, 1, OP), jnp.float32),
        grid=(B, L),
        in_specs=[
            pl.BlockSpec((1, S, H), lambda b, l: (b, 0, 0)),                 # emb
            pl.BlockSpec((1, 1, S), lambda b, l: (b, 0, 0)),                 # key mask
            const_spec((2, H)),                                              # emb LN g/b
            pl.BlockSpec((1, 3 * nH, H, dH), lambda b, l: (l, 0, 0, 0)),     # wqkv
            pl.BlockSpec((1, 3 * nH, 1, dH), lambda b, l: (l, 0, 0, 0)),     # bqkv
            pl.BlockSpec((1, nH, dH, H), lambda b, l: (l, 0, 0, 0)),         # wo
            pl.BlockSpec((1, 6, H), lambda b, l: (l, 0, 0)),                 # bo/ln1/bd/ln2
            pl.BlockSpec((1, H, I), lambda b, l: (l, 0, 0)),                 # wi
            pl.BlockSpec((1, 1, I), lambda b, l: (l, 0, 0)),                 # bi
            pl.BlockSpec((1, I, H), lambda b, l: (l, 0, 0)),                 # wd
            const_spec((H, 128)),                                            # fc1_w
            const_spec((1, 128)),                                            # fc1_b
            const_spec((128, OP)),                                           # fc2_w (padded)
            const_spec((1, OP)),                                             # fc2_b (padded)
        ],
        out_specs=pl.BlockSpec((1, 1, OP), lambda b, l: (b, 0, 0)),
        scratch_shapes=[pltpu.VMEM((S, H), jnp.float32)],
        # TODO(synk): at real BERT scale on v7x, single-buffer the grid-constant
        # inputs (pipeline_mode=pl.Buffered(1)) to keep the double-buffered
        # per-layer bf16 slabs within the 64 MiB VMEM budget.
        compiler_params=pltpu.CompilerParams(
            dimension_semantics=("parallel", "arbitrary"),
            vmem_limit_bytes=32 * 1024 * 1024),
    )(emb, mask_bias, embln,
      wqkv, bqkv, wo, vec6, wi, bi, wd,
      fc1w, fc1b, fc2w, fc2b)

    return out[:, 0, :O]                     # drop lane padding -> (B, output_num)


# ----------------------------------------------------------------------------
if __name__ == "__main__":
    key = jax.random.PRNGKey(0)
    k_param, k_ids, k_types = jax.random.split(key, 3)

    B, S = 2, 8
    params = init_params(k_param, CFG)

    input_ids = jax.random.randint(k_ids, (B, S), 0, CFG["vocab_size"], dtype=jnp.int32)
    token_type_ids = jax.random.randint(k_types, (B, S), 0, CFG["type_vocab_size"],
                                        dtype=jnp.int32)
    # mask out the last two key positions of the second example
    attention_mask = jnp.ones((B, S), jnp.int32).at[1, S - 2:].set(0)

    @jax.jit
    def forward(p, ids, types, mask):
        return bert_classification_forward(p, ids, types, mask, CFG)

    logits = forward(params, input_ids, token_type_ids, attention_mask)
    jax.block_until_ready(logits)
    assert logits.shape == (B, CFG["output_num"])
    assert bool(jnp.all(jnp.isfinite(logits)))
    print("KERNEL_OK")
</pallas_src>

<mosaic_0001>
module attributes {stable_mosaic.version = 11 : i64} {
  func.func @_encoder_kernel(%arg0: i32, %arg1: i32, %arg2: memref<1x8x32xf32, #tpu.memory_space<vmem>>, %arg3: memref<1x1x8xf32, #tpu.memory_space<vmem>>, %arg4: memref<2x32xf32, #tpu.memory_space<vmem>>, %arg5: memref<1x6x32x16xbf16, #tpu.memory_space<vmem>>, %arg6: memref<1x6x1x16xf32, #tpu.memory_space<vmem>>, %arg7: memref<1x2x16x32xbf16, #tpu.memory_space<vmem>>, %arg8: memref<1x6x32xf32, #tpu.memory_space<vmem>>, %arg9: memref<1x32x64xbf16, #tpu.memory_space<vmem>>, %arg10: memref<1x1x64xf32, #tpu.memory_space<vmem>>, %arg11: memref<1x64x32xbf16, #tpu.memory_space<vmem>>, %arg12: memref<32x128xbf16, #tpu.memory_space<vmem>>, %arg13: memref<1x128xf32, #tpu.memory_space<vmem>>, %arg14: memref<128x128xbf16, #tpu.memory_space<vmem>>, %arg15: memref<1x128xf32, #tpu.memory_space<vmem>>, %arg16: memref<1x1x128xf32, #tpu.memory_space<vmem>>, %arg17: memref<8x32xf32, #tpu.memory_space<vmem>>) attributes {dimension_semantics = [#tpu.dimension_semantics<parallel>, #tpu.dimension_semantics<arbitrary>], iteration_bounds = array<i64: 2, 2>, scalar_prefetch = 0 : i64, scratch_operands = 1 : i64, tpu.core_type = #tpu.core_type<tc>, window_params = [{transform_indices = @transform_0, window_bounds = array<i64: 1, 8, 32>}, {transform_indices = @transform_1, window_bounds = array<i64: 1, 1, 8>}, {pipeline_mode = #tpu.pipeline_mode<synchronous>, transform_indices = @transform_2, window_bounds = array<i64: 2, 32>}, {transform_indices = @transform_3, window_bounds = array<i64: 1, 6, 32, 16>}, {transform_indices = @transform_4, window_bounds = array<i64: 1, 6, 1, 16>}, {transform_indices = @transform_5, window_bounds = array<i64: 1, 2, 16, 32>}, {transform_indices = @transform_6, window_bounds = array<i64: 1, 6, 32>}, {transform_indices = @transform_7, window_bounds = array<i64: 1, 32, 64>}, {transform_indices = @transform_8, window_bounds = array<i64: 1, 1, 64>}, {transform_indices = @transform_9, window_bounds = array<i64: 1, 64, 32>}, {pipeline_mode = #tpu.pipeline_mode<synchronous>, transform_indices = @transform_10, window_bounds = array<i64: 32, 128>}, {pipeline_mode = #tpu.pipeline_mode<synchronous>, transform_indices = @transform_11, window_bounds = array<i64: 1, 128>}, {pipeline_mode = #tpu.pipeline_mode<synchronous>, transform_indices = @transform_12, window_bounds = array<i64: 128, 128>}, {pipeline_mode = #tpu.pipeline_mode<synchronous>, transform_indices = @transform_13, window_bounds = array<i64: 1, 128>}, {transform_indices = @transform_14, window_bounds = array<i64: 1, 1, 128>}]} {
    %c0_i32 = arith.constant 0 : i32
    %0 = arith.cmpi eq, %arg1, %c0_i32 : i32
    %1 = arith.extui %0 : i1 to i32
    %c0_i32_0 = arith.constant 0 : i32
    %2 = arith.cmpi ne, %1, %c0_i32_0 : i32
    scf.if %2 {
      %c0_54 = arith.constant 0 : index
      %c0_55 = arith.constant 0 : index
      %c0_56 = arith.constant 0 : index
      %124 = vector.load %arg2[%c0_54, %c0_55, %c0_56] : memref<1x8x32xf32, #tpu.memory_space<vmem>>, vector<1x8x32xf32>
      %125 = vector.shape_cast %124 : vector<1x8x32xf32> to vector<8x32xf32>
      %c0_57 = arith.constant 0 : index
      %c0_58 = arith.constant 0 : index
      %126 = vector.load %arg4[%c0_57, %c0_58] : memref<2x32xf32, #tpu.memory_space<vmem>>, vector<1x32xf32>
      %c1 = arith.constant 1 : index
      %c0_59 = arith.constant 0 : index
      %127 = vector.load %arg4[%c1, %c0_59] : memref<2x32xf32, #tpu.memory_space<vmem>>, vector<1x32xf32>
      %cst_60 = arith.constant dense<0.000000e+00> : vector<8xf32>
      %128 = vector.multi_reduction <add>, %125, %cst_60 [1] : vector<8x32xf32> to vector<8xf32>
      %129 = vector.shape_cast %128 : vector<8xf32> to vector<8x1xf32>
      %cst_61 = arith.constant 3.200000e+01 : f32
      %130 = vector.broadcast %cst_61 : f32 to vector<8x1xf32>
      %131 = arith.divf %129, %130 : vector<8x1xf32>
      %132 = vector.broadcast %131 : vector<8x1xf32> to vector<8x32xf32>
      %133 = arith.subf %125, %132 : vector<8x32xf32>
      %134 = arith.mulf %133, %133 : vector<8x32xf32>
      %cst_62 = arith.constant dense<0.000000e+00> : vector<8xf32>
      %135 = vector.multi_reduction <add>, %134, %cst_62 [1] : vector<8x32xf32> to vector<8xf32>
      %136 = vector.shape_cast %135 : vector<8xf32> to vector<8x1xf32>
      %cst_63 = arith.constant 3.200000e+01 : f32
      %137 = vector.broadcast %cst_63 : f32 to vector<8x1xf32>
      %138 = arith.divf %136, %137 : vector<8x1xf32>
      %cst_64 = arith.constant 9.99999996E-13 : f32
      %139 = vector.broadcast %cst_64 : f32 to vector<8x1xf32>
      %140 = arith.addf %138, %139 : vector<8x1xf32>
      %141 = math.rsqrt %140 : vector<8x1xf32>
      %142 = vector.broadcast %141 : vector<8x1xf32> to vector<8x32xf32>
      %143 = arith.mulf %133, %142 : vector<8x32xf32>
      %144 = vector.broadcast %126 : vector<1x32xf32> to vector<8x32xf32>
      %145 = arith.mulf %143, %144 : vector<8x32xf32>
      %146 = vector.broadcast %127 : vector<1x32xf32> to vector<8x32xf32>
      %147 = arith.addf %145, %146 : vector<8x32xf32>
      %c0_65 = arith.constant 0 : index
      %c0_66 = arith.constant 0 : index
      %148 = vector.load %arg17[%c0_65, %c0_66] : memref<8x32xf32, #tpu.memory_space<vmem>>, vector<8x32xf32>
      tpu.vector_store %arg17[%c0_65, %c0_66], %147 {strides = array<i32>} : memref<8x32xf32, #tpu.memory_space<vmem>>, vector<8x32xf32>,
    } else {
    }
    %c0 = arith.constant 0 : index
    %c0_1 = arith.constant 0 : index
    %3 = vector.load %arg17[%c0, %c0_1] : memref<8x32xf32, #tpu.memory_space<vmem>>, vector<8x32xf32>
    %4 = arith.truncf %3 : vector<8x32xf32> to vector<8x32xbf16>
    %5 = vector.shape_cast %4 : vector<8x32xbf16> to vector<1x8x32xbf16>
    %6 = vector.broadcast %5 : vector<1x8x32xbf16> to vector<6x8x32xbf16>
    %c0_2 = arith.constant 0 : index
    %c0_3 = arith.constant 0 : index
    %c0_4 = arith.constant 0 : index
    %c0_5 = arith.constant 0 : index
    %7 = vector.load %arg5[%c0_2, %c0_3, %c0_4, %c0_5] : memref<1x6x32x16xbf16, #tpu.memory_space<vmem>>, vector<1x6x32x16xbf16>
    %8 = vector.shape_cast %7 : vector<1x6x32x16xbf16> to vector<6x32x16xbf16>
    %cst = arith.constant dense<0.000000e+00> : vector<6x8x16xf32>
    %9 = tpu.matmul %6, %8, %cst {dimension_numbers = #tpu.dot_dimension_numbers<[2], [1], [1], [2], [0, 0, 0, 1, 1, 2], [0], [0]>} : vector<6x8x32xbf16>, vector<6x32x16xbf16>, vector<6x8x16xf32> -> vector<6x8x16xf32>
    %c0_6 = arith.constant 0 : index
    %c0_7 = arith.constant 0 : index
    %c0_8 = arith.constant 0 : index
    %c0_9 = arith.constant 0 : index
    %10 = vector.load %arg6[%c0_6, %c0_7, %c0_8, %c0_9] : memref<1x6x1x16xf32, #tpu.memory_space<vmem>>, vector<1x6x1x16xf32>
    %11 = vector.shape_cast %10 : vector<1x6x1x16xf32> to vector<6x1x16xf32>
    %12 = vector.broadcast %11 : vector<6x1x16xf32> to vector<6x8x16xf32>
    %13 = arith.addf %9, %12 : vector<6x8x16xf32>
    %14 = vector.extract_strided_slice %13 {offsets = [0, 0, 0], sizes = [2, 8, 16], strides = [1, 1, 1]} : vector<6x8x16xf32> to vector<2x8x16xf32>
    %15 = vector.extract_strided_slice %13 {offsets = [2, 0, 0], sizes = [2, 8, 16], strides = [1, 1, 1]} : vector<6x8x16xf32> to vector<2x8x16xf32>
    %16 = vector.extract_strided_slice %13 {offsets = [4, 0, 0], sizes = [2, 8, 16], strides = [1, 1, 1]} : vector<6x8x16xf32> to vector<2x8x16xf32>
    %17 = arith.truncf %14 : vector<2x8x16xf32> to vector<2x8x16xbf16>
    %18 = arith.truncf %15 : vector<2x8x16xf32> to vector<2x8x16xbf16>
    %cst_10 = arith.constant dense<0.000000e+00> : vector<2x8x8xf32>
    %19 = tpu.matmul %17, %18, %cst_10 {dimension_numbers = #tpu.dot_dimension_numbers<[2], [2], [1], [1], [0, 0, 0, 1, 1, 1], [0], [0]>} : vector<2x8x16xbf16>, vector<2x8x16xbf16>, vector<2x8x8xf32> -> vector<2x8x8xf32>
    %c0_11 = arith.constant 0 : index
    %c0_12 = arith.constant 0 : index
    %c0_13 = arith.constant 0 : index
    %20 = vector.load %arg3[%c0_11, %c0_12, %c0_13] : memref<1x1x8xf32, #tpu.memory_space<vmem>>, vector<1x1x8xf32>
    %21 = vector.broadcast %20 : vector<1x1x8xf32> to vector<2x8x8xf32>
    %22 = arith.addf %19, %21 : vector<2x8x8xf32>
    %cst_14 = arith.constant dense<0xFF800000> : vector<2x8xf32>
    %23 = vector.multi_reduction <maximumf>, %22, %cst_14 [2] : vector<2x8x8xf32> to vector<2x8xf32>
    %24 = vector.shape_cast %23 : vector<2x8xf32> to vector<2x8x1xf32>
    %25 = vector.broadcast %24 : vector<2x8x1xf32> to vector<2x8x8xf32>
    %26 = arith.subf %22, %25 : vector<2x8x8xf32>
    %27 = math.exp %26 : vector<2x8x8xf32>
    %cst_15 = arith.constant dense<0.000000e+00> : vector<2x8xf32>
    %28 = vector.multi_reduction <add>, %27, %cst_15 [2] : vector<2x8x8xf32> to vector<2x8xf32>
    %29 = vector.shape_cast %28 : vector<2x8xf32> to vector<2x8x1xf32>
    %30 = tpu.reciprocal %29 {approx = true} : vector<2x8x1xf32> -> vector<2x8x1xf32>
    %31 = vector.broadcast %30 : vector<2x8x1xf32> to vector<2x8x8xf32>
    %32 = arith.mulf %27, %31 : vector<2x8x8xf32>
    %33 = arith.truncf %32 : vector<2x8x8xf32> to vector<2x8x8xbf16>
    %34 = arith.truncf %16 : vector<2x8x16xf32> to vector<2x8x16xbf16>
    %cst_16 = arith.constant dense<0.000000e+00> : vector<2x8x16xf32>
    %35 = tpu.matmul %33, %34, %cst_16 {dimension_numbers = #tpu.dot_dimension_numbers<[2], [1], [1], [2], [0, 0, 0, 1, 1, 2], [0], [0]>} : vector<2x8x8xbf16>, vector<2x8x16xbf16>, vector<2x8x16xf32> -> vector<2x8x16xf32>
    %36 = arith.truncf %35 : vector<2x8x16xf32> to vector<2x8x16xbf16>
    %c0_17 = arith.constant 0 : index
    %c0_18 = arith.constant 0 : index
    %c0_19 = arith.constant 0 : index
    %c0_20 = arith.constant 0 : index
    %37 = vector.load %arg7[%c0_17, %c0_18, %c0_19, %c0_20] : memref<1x2x16x32xbf16, #tpu.memory_space<vmem>>, vector<1x2x16x32xbf16>
    %38 = vector.shape_cast %37 : vector<1x2x16x32xbf16> to vector<2x16x32xbf16>
    %cst_21 = arith.constant dense<0.000000e+00> : vector<2x8x32xf32>
    %39 = tpu.matmul %36, %38, %cst_21 {dimension_numbers = #tpu.dot_dimension_numbers<[2], [1], [1], [2], [0, 0, 0, 1, 1, 2], [0], [0]>} : vector<2x8x16xbf16>, vector<2x16x32xbf16>, vector<2x8x32xf32> -> vector<2x8x32xf32>
    %c0_22 = arith.constant 0 : index
    %c0_23 = arith.constant 0 : index
    %c0_24 = arith.constant 0 : index
    %40 = vector.load %arg8[%c0_22, %c0_23, %c0_24] : memref<1x6x32xf32, #tpu.memory_space<vmem>>, vector<1x6x32xf32>
    %41 = vector.shape_cast %40 : vector<1x6x32xf32> to vector<6x32xf32>
    %cst_25 = arith.constant dense<0.000000e+00> : vector<8x32xf32>
    %42 = vector.multi_reduction <add>, %39, %cst_25 [0] : vector<2x8x32xf32> to vector<8x32xf32>
    %43 = vector.extract_strided_slice %41 {offsets = [0, 0], sizes = [1, 32], strides = [1, 1]} : vector<6x32xf32> to vector<1x32xf32>
    %44 = vector.broadcast %43 : vector<1x32xf32> to vector<8x32xf32>
    %45 = arith.addf %42, %44 : vector<8x32xf32>
    %46 = arith.addf %45, %3 : vector<8x32xf32>
    %47 = vector.extract_strided_slice %41 {offsets = [1, 0], sizes = [1, 32], strides = [1, 1]} : vector<6x32xf32> to vector<1x32xf32>
    %48 = vector.extract_strided_slice %41 {offsets = [2, 0], sizes = [1, 32], strides = [1, 1]} : vector<6x32xf32> to vector<1x32xf32>
    %cst_26 = arith.constant dense<0.000000e+00> : vector<8xf32>
    %49 = vector.multi_reduction <add>, %46, %cst_26 [1] : vector<8x32xf32> to vector<8xf32>
    %50 = vector.shape_cast %49 : vector<8xf32> to vector<8x1xf32>
    %cst_27 = arith.constant 3.200000e+01 : f32
    %51 = vector.broadcast %cst_27 : f32 to vector<8x1xf32>
    %52 = arith.divf %50, %51 : vector<8x1xf32>
    %53 = vector.broadcast %52 : vector<8x1xf32> to vector<8x32xf32>
    %54 = arith.subf %46, %53 : vector<8x32xf32>
    %55 = arith.mulf %54, %54 : vector<8x32xf32>
    %cst_28 = arith.constant dense<0.000000e+00> : vector<8xf32>
    %56 = vector.multi_reduction <add>, %55, %cst_28 [1] : vector<8x32xf32> to vector<8xf32>
    %57 = vector.shape_cast %56 : vector<8xf32> to vector<8x1xf32>
    %cst_29 = arith.constant 3.200000e+01 : f32
    %58 = vector.broadcast %cst_29 : f32 to vector<8x1xf32>
    %59 = arith.divf %57, %58 : vector<8x1xf32>
    %cst_30 = arith.constant 9.99999996E-13 : f32
    %60 = vector.broadcast %cst_30 : f32 to vector<8x1xf32>
    %61 = arith.addf %59, %60 : vector<8x1xf32>
    %62 = math.rsqrt %61 : vector<8x1xf32>
    %63 = vector.broadcast %62 : vector<8x1xf32> to vector<8x32xf32>
    %64 = arith.mulf %54, %63 : vector<8x32xf32>
    %65 = vector.broadcast %47 : vector<1x32xf32> to vector<8x32xf32>
    %66 = arith.mulf %64, %65 : vector<8x32xf32>
    %67 = vector.broadcast %48 : vector<1x32xf32> to vector<8x32xf32>
    %68 = arith.addf %66, %67 : vector<8x32xf32>
    %69 = arith.truncf %68 : vector<8x32xf32> to vector<8x32xbf16>
    %c0_31 = arith.constant 0 : index
    %c0_32 = arith.constant 0 : index
    %c0_33 = arith.constant 0 : index
    %70 = vector.load %arg9[%c0_31, %c0_32, %c0_33] : memref<1x32x64xbf16, #tpu.memory_space<vmem>>, vector<1x32x64xbf16>
    %71 = vector.shape_cast %70 : vector<1x32x64xbf16> to vector<32x64xbf16>
    %cst_34 = arith.constant dense<0.000000e+00> : vector<8x64xf32>
    %72 = tpu.matmul %69, %71, %cst_34 {dimension_numbers = #tpu.dot_dimension_numbers<[1], [0], [0], [1], [0, 0, 1, 1], [], []>} : vector<8x32xbf16>, vector<32x64xbf16>, vector<8x64xf32> -> vector<8x64xf32>
    %c0_35 = arith.constant 0 : index
    %c0_36 = arith.constant 0 : index
    %c0_37 = arith.constant 0 : index
    %73 = vector.load %arg10[%c0_35, %c0_36, %c0_37] : memref<1x1x64xf32, #tpu.memory_space<vmem>>, vector<1x1x64xf32>
    %74 = vector.shape_cast %73 : vector<1x1x64xf32> to vector<1x64xf32>
    %75 = vector.broadcast %74 : vector<1x64xf32> to vector<8x64xf32>
    %76 = arith.addf %72, %75 : vector<8x64xf32>
    %77 = arith.mulf %76, %76 : vector<8x64xf32>
    %78 = arith.mulf %76, %77 : vector<8x64xf32>
    %cst_38 = arith.constant 4.471500e-02 : f32
    %79 = vector.broadcast %cst_38 : f32 to vector<8x64xf32>
    %80 = arith.mulf %79, %78 : vector<8x64xf32>
    %81 = arith.addf %76, %80 : vector<8x64xf32>
    %cst_39 = arith.constant 0.797884583 : f32
    %82 = vector.broadcast %cst_39 : f32 to vector<8x64xf32>
    %83 = arith.mulf %82, %81 : vector<8x64xf32>
    %84 = math.tanh %83 : vector<8x64xf32>
    %cst_40 = arith.constant 1.000000e+00 : f32
    %85 = vector.broadcast %cst_40 : f32 to vector<8x64xf32>
    %86 = arith.addf %85, %84 : vector<8x64xf32>
    %cst_41 = arith.constant 5.000000e-01 : f32
    %87 = vector.broadcast %cst_41 : f32 to vector<8x64xf32>
    %88 = arith.mulf %87, %86 : vector<8x64xf32>
    %89 = arith.mulf %76, %88 : vector<8x64xf32>
    %90 = arith.truncf %89 : vector<8x64xf32> to vector<8x64xbf16>
    %c0_42 = arith.constant 0 : index
    %c0_43 = arith.constant 0 : index
    %c0_44 = arith.constant 0 : index
    %91 = vector.load %arg11[%c0_42, %c0_43, %c0_44] : memref<1x64x32xbf16, #tpu.memory_space<vmem>>, vector<1x64x32xbf16>
    %92 = vector.shape_cast %91 : vector<1x64x32xbf16> to vector<64x32xbf16>
    %cst_45 = arith.constant dense<0.000000e+00> : vector<8x32xf32>
    %93 = tpu.matmul %90, %92, %cst_45 {dimension_numbers = #tpu.dot_dimension_numbers<[1], [0], [0], [1], [0, 0, 1, 1], [], []>} : vector<8x64xbf16>, vector<64x32xbf16>, vector<8x32xf32> -> vector<8x32xf32>
    %94 = vector.extract_strided_slice %41 {offsets = [3, 0], sizes = [1, 32], strides = [1, 1]} : vector<6x32xf32> to vector<1x32xf32>
    %95 = vector.broadcast %94 : vector<1x32xf32> to vector<8x32xf32>
    %96 = arith.addf %93, %95 : vector<8x32xf32>
    %97 = arith.addf %96, %68 : vector<8x32xf32>
    %98 = vector.extract_strided_slice %41 {offsets = [4, 0], sizes = [1, 32], strides = [1, 1]} : vector<6x32xf32> to vector<1x32xf32>
    %99 = vector.extract_strided_slice %41 {offsets = [5, 0], sizes = [1, 32], strides = [1, 1]} : vector<6x32xf32> to vector<1x32xf32>
    %cst_46 = arith.constant dense<0.000000e+00> : vector<8xf32>
    %100 = vector.multi_reduction <add>, %97, %cst_46 [1] : vector<8x32xf32> to vector<8xf32>
    %101 = vector.shape_cast %100 : vector<8xf32> to vector<8x1xf32>
    %cst_47 = arith.constant 3.200000e+01 : f32
    %102 = vector.broadcast %cst_47 : f32 to vector<8x1xf32>
    %103 = arith.divf %101, %102 : vector<8x1xf32>
    %104 = vector.broadcast %103 : vector<8x1xf32> to vector<8x32xf32>
    %105 = arith.subf %97, %104 : vector<8x32xf32>
    %106 = arith.mulf %105, %105 : vector<8x32xf32>
    %cst_48 = arith.constant dense<0.000000e+00> : vector<8xf32>
    %107 = vector.multi_reduction <add>, %106, %cst_48 [1] : vector<8x32xf32> to vector<8xf32>
    %108 = vector.shape_cast %107 : vector<8xf32> to vector<8x1xf32>
    %cst_49 = arith.constant 3.200000e+01 : f32
    %109 = vector.broadcast %cst_49 : f32 to vector<8x1xf32>
    %110 = arith.divf %108, %109 : vector<8x1xf32>
    %cst_50 = arith.constant 9.99999996E-13 : f32
    %111 = vector.broadcast %cst_50 : f32 to vector<8x1xf32>
    %112 = arith.addf %110, %111 : vector<8x1xf32>
    %113 = math.rsqrt %112 : vector<8x1xf32>
    %114 = vector.broadcast %113 : vector<8x1xf32> to vector<8x32xf32>
    %115 = arith.mulf %105, %114 : vector<8x32xf32>
    %116 = vector.broadcast %98 : vector<1x32xf32> to vector<8x32xf32>
    %117 = arith.mulf %115, %116 : vector<8x32xf32>
    %118 = vector.broadcast %99 : vector<1x32xf32> to vector<8x32xf32>
    %119 = arith.addf %117, %118 : vector<8x32xf32>
    %c0_51 = arith.constant 0 : index
    %c0_52 = arith.constant 0 : index
    %120 = vector.load %arg17[%c0_51, %c0_52] : memref<8x32xf32, #tpu.memory_space<vmem>>, vector<8x32xf32>
    tpu.vector_store %arg17[%c0_51, %c0_52], %119 {strides = array<i32>} : memref<8x32xf32, #tpu.memory_space<vmem>>, vector<8x32xf32>,
    %c1_i32 = arith.constant 1 : i32
    %121 = arith.cmpi eq, %arg1, %c1_i32 : i32
    %122 = arith.extui %121 : i1 to i32
    %c0_i32_53 = arith.constant 0 : i32
    %123 = arith.cmpi ne, %122, %c0_i32_53 : i32
    scf.if %123 {
      %124 = vector.extract_strided_slice %119 {offsets = [0, 0], sizes = [1, 32], strides = [1, 1]} : vector<8x32xf32> to vector<1x32xf32>
      %125 = arith.truncf %124 : vector<1x32xf32> to vector<1x32xbf16>
      %c0_54 = arith.constant 0 : index
      %c0_55 = arith.constant 0 : index
      %126 = vector.load %arg12[%c0_54, %c0_55] : memref<32x128xbf16, #tpu.memory_space<vmem>>, vector<32x128xbf16>
      %cst_56 = arith.constant dense<0.000000e+00> : vector<1x128xf32>
      %127 = tpu.matmul %125, %126, %cst_56 {dimension_numbers = #tpu.dot_dimension_numbers<[1], [0], [0], [1], [0, 0, 1, 1], [], []>} : vector<1x32xbf16>, vector<32x128xbf16>, vector<1x128xf32> -> vector<1x128xf32>
      %c0_57 = arith.constant 0 : index
      %c0_58 = arith.constant 0 : index
      %128 = vector.load %arg13[%c0_57, %c0_58] : memref<1x128xf32, #tpu.memory_space<vmem>>, vector<1x128xf32>
      %129 = arith.addf %127, %128 : vector<1x128xf32>
      %cst_59 = arith.constant 0.000000e+00 : f32
      %130 = vector.broadcast %cst_59 : f32 to vector<1x128xf32>
      %131 = arith.maximumf %129, %130 : vector<1x128xf32>
      %132 = arith.truncf %131 : vector<1x128xf32> to vector<1x128xbf16>
      %c0_60 = arith.constant 0 : index
      %c0_61 = arith.constant 0 : index
      %133 = vector.load %arg14[%c0_60, %c0_61] : memref<128x128xbf16, #tpu.memory_space<vmem>>, vector<128x128xbf16>
      %cst_62 = arith.constant dense<0.000000e+00> : vector<1x128xf32>
      %134 = tpu.matmul %132, %133, %cst_62 {dimension_numbers = #tpu.dot_dimension_numbers<[1], [0], [0], [1], [0, 0, 1, 1], [], []>} : vector<1x128xbf16>, vector<128x128xbf16>, vector<1x128xf32> -> vector<1x128xf32>
      %c0_63 = arith.constant 0 : index
      %c0_64 = arith.constant 0 : index
      %135 = vector.load %arg15[%c0_63, %c0_64] : memref<1x128xf32, #tpu.memory_space<vmem>>, vector<1x128xf32>
      %136 = arith.addf %134, %135 : vector<1x128xf32>
      %c0_65 = arith.constant 0 : index
      %c0_66 = arith.constant 0 : index
      %c0_67 = arith.constant 0 : index
      %137 = vector.load %arg16[%c0_65, %c0_66, %c0_67] : memref<1x1x128xf32, #tpu.memory_space<vmem>>, vector<1x1x128xf32>
      %138 = vector.shape_cast %137 : vector<1x1x128xf32> to vector<1x128xf32>
      %139 = vector.shape_cast %136 : vector<1x128xf32> to vector<1x1x128xf32>
      tpu.vector_store %arg16[%c0_65, %c0_66, %c0_67], %139 {strides = array<i32>} : memref<1x1x128xf32, #tpu.memory_space<vmem>>, vector<1x1x128xf32>,
    } else {
    }
    return
  }
  func.func @transform_0(%arg0: i32, %arg1: i32) -> (i32, i32, i32) {
    %c0_i32 = arith.constant 0 : i32
    %c0_i32_0 = arith.constant 0 : i32
    %c0_i32_1 = arith.constant 0 : i32
    return %arg0, %c0_i32, %c0_i32_0 : i32, i32, i32
  }
  func.func @transform_1(%arg0: i32, %arg1: i32) -> (i32, i32, i32) {
    %c0_i32 = arith.constant 0 : i32
    %c0_i32_0 = arith.constant 0 : i32
    %c0_i32_1 = arith.constant 0 : i32
    return %arg0, %c0_i32, %c0_i32_0 : i32, i32, i32
  }
  func.func @transform_2(%arg0: i32, %arg1: i32) -> (i32, i32) {
    %c0_i32 = arith.constant 0 : i32
    %c0_i32_0 = arith.constant 0 : i32
    %c0_i32_1 = arith.constant 0 : i32
    return %c0_i32, %c0_i32_0 : i32, i32
  }
  func.func @transform_3(%arg0: i32, %arg1: i32) -> (i32, i32, i32, i32) {
    %c0_i32 = arith.constant 0 : i32
    %c0_i32_0 = arith.constant 0 : i32
    %c0_i32_1 = arith.constant 0 : i32
    %c0_i32_2 = arith.constant 0 : i32
    return %arg1, %c0_i32, %c0_i32_0, %c0_i32_1 : i32, i32, i32, i32
  }
  func.func @transform_4(%arg0: i32, %arg1: i32) -> (i32, i32, i32, i32) {
    %c0_i32 = arith.constant 0 : i32
    %c0_i32_0 = arith.constant 0 : i32
    %c0_i32_1 = arith.constant 0 : i32
    %c0_i32_2 = arith.constant 0 : i32
    return %arg1, %c0_i32, %c0_i32_0, %c0_i32_1 : i32, i32, i32, i32
  }
  func.func @transform_5(%arg0: i32, %arg1: i32) -> (i32, i32, i32, i32) {
    %c0_i32 = arith.constant 0 : i32
    %c0_i32_0 = arith.constant 0 : i32
    %c0_i32_1 = arith.constant 0 : i32
    %c0_i32_2 = arith.constant 0 : i32
    return %arg1, %c0_i32, %c0_i32_0, %c0_i32_1 : i32, i32, i32, i32
  }
  func.func @transform_6(%arg0: i32, %arg1: i32) -> (i32, i32, i32) {
    %c0_i32 = arith.constant 0 : i32
    %c0_i32_0 = arith.constant 0 : i32
    %c0_i32_1 = arith.constant 0 : i32
    return %arg1, %c0_i32, %c0_i32_0 : i32, i32, i32
  }
  func.func @transform_7(%arg0: i32, %arg1: i32) -> (i32, i32, i32) {
    %c0_i32 = arith.constant 0 : i32
    %c0_i32_0 = arith.constant 0 : i32
    %c0_i32_1 = arith.constant 0 : i32
    return %arg1, %c0_i32, %c0_i32_0 : i32, i32, i32
  }
  func.func @transform_8(%arg0: i32, %arg1: i32) -> (i32, i32, i32) {
    %c0_i32 = arith.constant 0 : i32
    %c0_i32_0 = arith.constant 0 : i32
    %c0_i32_1 = arith.constant 0 : i32
    return %arg1, %c0_i32, %c0_i32_0 : i32, i32, i32
  }
  func.func @transform_9(%arg0: i32, %arg1: i32) -> (i32, i32, i32) {
    %c0_i32 = arith.constant 0 : i32
    %c0_i32_0 = arith.constant 0 : i32
    %c0_i32_1 = arith.constant 0 : i32
    return %arg1, %c0_i32, %c0_i32_0 : i32, i32, i32
  }
  func.func @transform_10(%arg0: i32, %arg1: i32) -> (i32, i32) {
    %c0_i32 = arith.constant 0 : i32
    %c0_i32_0 = arith.constant 0 : i32
    %c0_i32_1 = arith.constant 0 : i32
    return %c0_i32, %c0_i32_0 : i32, i32
  }
  func.func @transform_11(%arg0: i32, %arg1: i32) -> (i32, i32) {
    %c0_i32 = arith.constant 0 : i32
    %c0_i32_0 = arith.constant 0 : i32
    %c0_i32_1 = arith.constant 0 : i32
    return %c0_i32, %c0_i32_0 : i32, i32
  }
  func.func @transform_12(%arg0: i32, %arg1: i32) -> (i32, i32) {
    %c0_i32 = arith.constant 0 : i32
    %c0_i32_0 = arith.constant 0 : i32
    %c0_i32_1 = arith.constant 0 : i32
    return %c0_i32, %c0_i32_0 : i32, i32
  }
  func.func @transform_13(%arg0: i32, %arg1: i32) -> (i32, i32) {
    %c0_i32 = arith.constant 0 : i32
    %c0_i32_0 = arith.constant 0 : i32
    %c0_i32_1 = arith.constant 0 : i32
    return %c0_i32, %c0_i32_0 : i32, i32
  }
  func.func @transform_14(%arg0: i32, %arg1: i32) -> (i32, i32, i32) {
    %c0_i32 = arith.constant 0 : i32
    %c0_i32_0 = arith.constant 0 : i32
    %c0_i32_1 = arith.constant 0 : i32
    return %arg0, %c0_i32, %c0_i32_0 : i32, i32, i32
  }
}

</mosaic_0001>

<llo_original>
// kernel: forward.1
$region0: #{forward.1}
  #allocation0 [shape = 'u32[]', space=smem, size = 0x4, offset = 0x4, fixed_abs, tag = 'smem constant byte address 0x4 - core index']
  #allocation1 [shape = 'u32[72,128]{1,0:T(1,128)}', space=vmem, size = 0x9000, scoped, tag = 'internal scratch']
  #allocation2 [shape = 'f32[8,32]{1,0:T(8,128)}', space=vmem, size = 0x1000, scoped, tag = 'scratch operand']
  %s0 = inlined_call_operand.vmem [shape: f32[2,8,32], index: 0, kind: input, shape index: {}]
  %s1 = inlined_call_operand.vmem [shape: f32[2,1,8], index: 1, kind: input, shape index: {}]
  %s2 = inlined_call_operand.vmem [shape: f32[2,32], index: 2, kind: input, shape index: {}]
  %s3 = inlined_call_operand.vmem [shape: bf16[2,6,32,16], index: 3, kind: input, shape index: {}]
  %s4 = inlined_call_operand.vmem [shape: f32[2,6,1,16], index: 4, kind: input, shape index: {}]
  %s5 = inlined_call_operand.vmem [shape: bf16[2,2,16,32], index: 5, kind: input, shape index: {}]
  %s6 = inlined_call_operand.vmem [shape: f32[2,6,32], index: 6, kind: input, shape index: {}]
  %s7 = inlined_call_operand.vmem [shape: bf16[2,32,64], index: 7, kind: input, shape index: {}]
  %s8 = inlined_call_operand.vmem [shape: f32[2,1,64], index: 8, kind: input, shape index: {}]
  %s9 = inlined_call_operand.vmem [shape: bf16[2,64,32], index: 9, kind: input, shape index: {}]
  %s10 = inlined_call_operand.vmem [shape: bf16[32,128], index: 10, kind: input, shape index: {}]
  %s11 = inlined_call_operand.vmem [shape: f32[1,128], index: 11, kind: input, shape index: {}]
  %s12 = inlined_call_operand.vmem [shape: bf16[128,128], index: 12, kind: input, shape index: {}]
  %s13 = inlined_call_operand.vmem [shape: f32[1,128], index: 13, kind: input, shape index: {}]
  %s14 = inlined_call_operand.hbm [shape: f32[2,1,128], index: 14, kind: output, shape index: {}]
  %s15 = sld [smem:[#allocation0]]
  $region97: #{forward.1} parent=0
    _
  %s17 = ssub.s32 1, %s15
  %s18 = scalar_select 0, %s17, %s15
  $region1: #{forward.1} parent=0
    #allocation3 [shape = 'u8[1024]{0}', space=vmem, size = 0x400, scoped, tag = 'output window, operand 0']
    #allocation4 [shape = 's32[2]{0}', space=sflag, size = 0x8, scoped, tag = 'scoped memory for forward.1']
    %19 = vsyncpa [#allocation4], 0
    %s20 = scalar_lea.sflag [#allocation4], 1
    %21 = vsyncpa %s20, 0
    loop: start=0, step=1, limit=6
    $region2: #{forward.1} parent=1 // loop_pre_header
      _
    $region3: #{forward.1} parent=1 // loop_header
      %s23 = sphi 0, %s27
      %p24 = scmp.ge.s32.totalorder %s23, 6
      %s30 = sphi 0, %s42
      %s31 = sphi 0, %s38
      %s32 = sphi 0, %s30
      %s33 = sphi 0, %s31
      %s34 = sphi 0, %s32
      %s35 = sphi 0, %s33
      %s45 = sphi 0, %s47
      %s48 = sphi 0, %s45
      %s49 = sphi 0, %s48
      %s65 = sphi 0, %s49
      %s71 = sphi 0, %s73
      %s74 = sphi 0, %s71
      %s75 = sphi 0, %s74
      %s91 = sphi 0, %s75
      %s95 = sphi 0, %s95
      %s97 = sphi 0, %s95
      %s98 = sphi 0, %s97
      %s112 = sphi 0, %s98
      %s118 = sphi 0, %s120
      %s121 = sphi 0, %s118
      %s122 = sphi 0, %s121
      %s138 = sphi 0, %s122
      %s144 = sphi 0, %s146
      %s147 = sphi 0, %s144
      %s148 = sphi 0, %s147
      %s164 = sphi 0, %s148
      %s170 = sphi 0, %s172
      %s173 = sphi 0, %s170
      %s174 = sphi 0, %s173
      %s190 = sphi 0, %s174
      %s196 = sphi 0, %s198
      %s199 = sphi 0, %s196
      %s200 = sphi 0, %s199
      %s216 = sphi 0, %s200
      %s222 = sphi 0, %s224
      %s225 = sphi 0, %s222
      %s226 = sphi 0, %s225
      %s242 = sphi 0, %s226
      %s248 = sphi 0, %s250
      %s251 = sphi 0, %s248
      %s252 = sphi 0, %s251
      %s268 = sphi 0, %s252
      %s274 = sphi 0, %s276
      %s277 = sphi 0, %s274
      %s278 = sphi 0, %s277
      %s294 = sphi 0, %s278
      %s298 = sphi 0, %s298
      %s300 = sphi 0, %s298
      %s301 = sphi 0, %s300
      %s315 = sphi 0, %s301
      %s319 = sphi 0, %s319
      %s321 = sphi 0, %s319
      %s322 = sphi 0, %s321
      %s336 = sphi 0, %s322
      %s340 = sphi 0, %s340
      %s342 = sphi 0, %s340
      %s343 = sphi 0, %s342
      %s357 = sphi 0, %s343
      %s361 = sphi 0, %s361
      %s363 = sphi 0, %s361
      %s364 = sphi 0, %s363
      %s378 = sphi 0, %s364
      %s384 = sphi 0, %s386
      %s387 = sphi 0, %s384
      %s388 = sphi 0, %s387
      %s404 = sphi 0, %s388
    $region4: #{forward.1} parent=1 // loop_header_branch
      %26 = sbr.rel (%p24) target = $region8
    $region5: #{forward.1} parent=1 // loop_body
      %s28 = ssub.s32 %s23, 1
      %s29 = ssub.s32 %s23, 2
      %s36 = sadd.s32 1, %s31
      %p37 = scmp.ge.s32.totalorder %s36, 2
      %s38 = scalar_select %p37, 0, %s36
      %s39 = sadd.s32 1, %s30
      %s40 = scalar_select %p37, %s39, %s30
      %p41 = scmp.ge.s32.totalorder %s40, 2
      %s42 = scalar_select %p41, 0, %s40
      %s43 = ssub.s32 %s30, %s42
      %p44 = scmp.eq.s32.totalorder %s43, 0
      %s46 = sadd.s32 %s45, 1
      %s47 = scalar_select %p44, %s45, %s46
      %p50 = pneg %p44
      %p51 = scmp.eq.s32.totalorder %s23, 3
      %p52 = por %p50, %p51
      %p53 = scmp.ne.s32.totalorder %s45, %s48
      %p54 = scmp.eq.s32.totalorder %s23, 0
      %p55 = por %p53, %p54
      %p56 = scmp.ne.s32.totalorder %s45, %s48
      %p57 = scmp.eq.s32.totalorder %s28, 3
      %p58 = por %p56, %p57
      %p59 = scmp.ne.s32.totalorder %s48, %s49
      %p60 = scmp.eq.s32.totalorder %s28, 0
      %p61 = por %p59, %p60
      %p62 = scmp.ne.s32.totalorder %s48, %s49
      %p63 = scmp.eq.s32.totalorder %s29, 3
      %p64 = por %p62, %p63
      %p66 = scmp.ne.s32.totalorder %s49, %s65
      %p67 = scmp.eq.s32.totalorder %s29, 0
      %p68 = por %p66, %p67
      %s69 = ssub.s32 %s30, %s42
      %p70 = scmp.eq.s32.totalorder %s69, 0
      %s72 = sadd.s32 %s71, 1
      %s73 = scalar_select %p70, %s71, %s72
      %p76 = pneg %p70
      %p77 = scmp.eq.s32.totalorder %s23, 3
      %p78 = por %p76, %p77
      %p79 = scmp.ne.s32.totalorder %s71, %s74
      %p80 = scmp.eq.s32.totalorder %s23, 0
      %p81 = por %p79, %p80
      %p82 = scmp.ne.s32.totalorder %s71, %s74
      %p83 = scmp.eq.s32.totalorder %s28, 3
      %p84 = por %p82, %p83
      %p85 = scmp.ne.s32.totalorder %s74, %s75
      %p86 = scmp.eq.s32.totalorder %s28, 0
      %p87 = por %p85, %p86
      %p88 = scmp.ne.s32.totalorder %s74, %s75
      %p89 = scmp.eq.s32.totalorder %s29, 3
      %p90 = por %p88, %p89
      %p92 = scmp.ne.s32.totalorder %s75, %s91
      %p93 = scmp.eq.s32.totalorder %s29, 0
      %p94 = por %p92, %p93
      %s96 = sadd.s32 %s95, 1
      %p99 = scmp.eq.s32.totalorder %s23, 3
      %p100 = scmp.ne.s32.totalorder %s95, %s97
      %p101 = scmp.eq.s32.totalorder %s23, 0
      %p102 = por %p100, %p101
      %p103 = scmp.ne.s32.totalorder %s95, %s97
      %p104 = scmp.eq.s32.totalorder %s28, 3
      %p105 = por %p103, %p104
      %p106 = scmp.ne.s32.totalorder %s97, %s98
      %p107 = scmp.eq.s32.totalorder %s28, 0
      %p108 = por %p106, %p107
      %p109 = scmp.ne.s32.totalorder %s97, %s98
      %p110 = scmp.eq.s32.totalorder %s29, 3
      %p111 = por %p109, %p110
      %p113 = scmp.ne.s32.totalorder %s98, %s112
      %p114 = scmp.eq.s32.totalorder %s29, 0
      %p115 = por %p113, %p114
      %s116 = ssub.s32 %s31, %s38
      %p117 = scmp.eq.s32.totalorder %s116, 0
      %s119 = sadd.s32 %s118, 1
      %s120 = scalar_select %p117, %s118, %s119
      %p123 = pneg %p117
      %p124 = scmp.eq.s32.totalorder %s23, 3
      %p125 = por %p123, %p124
      %p126 = scmp.ne.s32.totalorder %s118, %s121
      %p127 = scmp.eq.s32.totalorder %s23, 0
      %p128 = por %p126, %p127
      %p129 = scmp.ne.s32.totalorder %s118, %s121
      %p130 = scmp.eq.s32.totalorder %s28, 3
      %p131 = por %p129, %p130
      %p132 = scmp.ne.s32.totalorder %s121, %s122
      %p133 = scmp.eq.s32.totalorder %s28, 0
      %p134 = por %p132, %p133
      %p135 = scmp.ne.s32.totalorder %s121, %s122
      %p136 = scmp.eq.s32.totalorder %s29, 3
      %p137 = por %p135, %p136
      %p139 = scmp.ne.s32.totalorder %s122, %s138
      %p140 = scmp.eq.s32.totalorder %s29, 0
      %p141 = por %p139, %p140
      %s142 = ssub.s32 %s31, %s38
      %p143 = scmp.eq.s32.totalorder %s142, 0
      %s145 = sadd.s32 %s144, 1
      %s146 = scalar_select %p143, %s144, %s145
      %p149 = pneg %p143
      %p150 = scmp.eq.s32.totalorder %s23, 3
      %p151 = por %p149, %p150
      %p152 = scmp.ne.s32.totalorder %s144, %s147
      %p153 = scmp.eq.s32.totalorder %s23, 0
      %p154 = por %p152, %p153
      %p155 = scmp.ne.s32.totalorder %s144, %s147
      %p156 = scmp.eq.s32.totalorder %s28, 3
      %p157 = por %p155, %p156
      %p158 = scmp.ne.s32.totalorder %s147, %s148
      %p159 = scmp.eq.s32.totalorder %s28, 0
      %p160 = por %p158, %p159
      %p161 = scmp.ne.s32.totalorder %s147, %s148
      %p162 = scmp.eq.s32.totalorder %s29, 3
      %p163 = por %p161, %p162
      %p165 = scmp.ne.s32.totalorder %s148, %s164
      %p166 = scmp.eq.s32.totalorder %s29, 0
      %p167 = por %p165, %p166
      %s168 = ssub.s32 %s31, %s38
      %p169 = scmp.eq.s32.totalorder %s168, 0
      %s171 = sadd.s32 %s170, 1
      %s172 = scalar_select %p169, %s170, %s171
      %p175 = pneg %p169
      %p176 = scmp.eq.s32.totalorder %s23, 3
      %p177 = por %p175, %p176
      %p178 = scmp.ne.s32.totalorder %s170, %s173
      %p179 = scmp.eq.s32.totalorder %s23, 0
      %p180 = por %p178, %p179
      %p181 = scmp.ne.s32.totalorder %s170, %s173
      %p182 = scmp.eq.s32.totalorder %s28, 3
      %p183 = por %p181, %p182
      %p184 = scmp.ne.s32.totalorder %s173, %s174
      %p185 = scmp.eq.s32.totalorder %s28, 0
      %p186 = por %p184, %p185
      %p187 = scmp.ne.s32.totalorder %s173, %s174
      %p188 = scmp.eq.s32.totalorder %s29, 3
      %p189 = por %p187, %p188
      %p191 = scmp.ne.s32.totalorder %s174, %s190
      %p192 = scmp.eq.s32.totalorder %s29, 0
      %p193 = por %p191, %p192
      %s194 = ssub.s32 %s31, %s38
      %p195 = scmp.eq.s32.totalorder %s194, 0
      %s197 = sadd.s32 %s196, 1
      %s198 = scalar_select %p195, %s196, %s197
      %p201 = pneg %p195
      %p202 = scmp.eq.s32.totalorder %s23, 3
      %p203 = por %p201, %p202
      %p204 = scmp.ne.s32.totalorder %s196, %s199
      %p205 = scmp.eq.s32.totalorder %s23, 0
      %p206 = por %p204, %p205
      %p207 = scmp.ne.s32.totalorder %s196, %s199
      %p208 = scmp.eq.s32.totalorder %s28, 3
      %p209 = por %p207, %p208
      %p210 = scmp.ne.s32.totalorder %s199, %s200
      %p211 = scmp.eq.s32.totalorder %s28, 0
      %p212 = por %p210, %p211
      %p213 = scmp.ne.s32.totalorder %s199, %s200
      %p214 = scmp.eq.s32.totalorder %s29, 3
      %p215 = por %p213, %p214
      %p217 = scmp.ne.s32.totalorder %s200, %s216
      %p218 = scmp.eq.s32.totalorder %s29, 0
      %p219 = por %p217, %p218
      %s220 = ssub.s32 %s31, %s38
      %p221 = scmp.eq.s32.totalorder %s220, 0
      %s223 = sadd.s32 %s222, 1
      %s224 = scalar_select %p221, %s222, %s223
      %p227 = pneg %p221
      %p228 = scmp.eq.s32.totalorder %s23, 3
      %p229 = por %p227, %p228
      %p230 = scmp.ne.s32.totalorder %s222, %s225
      %p231 = scmp.eq.s32.totalorder %s23, 0
      %p232 = por %p230, %p231
      %p233 = scmp.ne.s32.totalorder %s222, %s225
      %p234 = scmp.eq.s32.totalorder %s28, 3
      %p235 = por %p233, %p234
      %p236 = scmp.ne.s32.totalorder %s225, %s226
      %p237 = scmp.eq.s32.totalorder %s28, 0
      %p238 = por %p236, %p237
      %p239 = scmp.ne.s32.totalorder %s225, %s226
      %p240 = scmp.eq.s32.totalorder %s29, 3
      %p241 = por %p239, %p240
      %p243 = scmp.ne.s32.totalorder %s226, %s242
      %p244 = scmp.eq.s32.totalorder %s29, 0
      %p245 = por %p243, %p244
      %s246 = ssub.s32 %s31, %s38
      %p247 = scmp.eq.s32.totalorder %s246, 0
      %s249 = sadd.s32 %s248, 1
      %s250 = scalar_select %p247, %s248, %s249
      %p253 = pneg %p247
      %p254 = scmp.eq.s32.totalorder %s23, 3
      %p255 = por %p253, %p254
      %p256 = scmp.ne.s32.totalorder %s248, %s251
      %p257 = scmp.eq.s32.totalorder %s23, 0
      %p258 = por %p256, %p257
      %p259 = scmp.ne.s32.totalorder %s248, %s251
      %p260 = scmp.eq.s32.totalorder %s28, 3
      %p261 = por %p259, %p260
      %p262 = scmp.ne.s32.totalorder %s251, %s252
      %p263 = scmp.eq.s32.totalorder %s28, 0
      %p264 = por %p262, %p263
      %p265 = scmp.ne.s32.totalorder %s251, %s252
      %p266 = scmp.eq.s32.totalorder %s29, 3
      %p267 = por %p265, %p266
      %p269 = scmp.ne.s32.totalorder %s252, %s268
      %p270 = scmp.eq.s32.totalorder %s29, 0
      %p271 = por %p269, %p270
      %s272 = ssub.s32 %s31, %s38
      %p273 = scmp.eq.s32.totalorder %s272, 0
      %s275 = sadd.s32 %s274, 1
      %s276 = scalar_select %p273, %s274, %s275
      %p279 = pneg %p273
      %p280 = scmp.eq.s32.totalorder %s23, 3
      %p281 = por %p279, %p280
      %p282 = scmp.ne.s32.totalorder %s274, %s277
      %p283 = scmp.eq.s32.totalorder %s23, 0
      %p284 = por %p282, %p283
      %p285 = scmp.ne.s32.totalorder %s274, %s277
      %p286 = scmp.eq.s32.totalorder %s28, 3
      %p287 = por %p285, %p286
      %p288 = scmp.ne.s32.totalorder %s277, %s278
      %p289 = scmp.eq.s32.totalorder %s28, 0
      %p290 = por %p288, %p289
      %p291 = scmp.ne.s32.totalorder %s277, %s278
      %p292 = scmp.eq.s32.totalorder %s29, 3
      %p293 = por %p291, %p292
      %p295 = scmp.ne.s32.totalorder %s278, %s294
      %p296 = scmp.eq.s32.totalorder %s29, 0
      %p297 = por %p295, %p296
      %s299 = sadd.s32 %s298, 1
      %p302 = scmp.eq.s32.totalorder %s23, 3
      %p303 = scmp.ne.s32.totalorder %s298, %s300
      %p304 = scmp.eq.s32.totalorder %s23, 0
      %p305 = por %p303, %p304
      %p306 = scmp.ne.s32.totalorder %s298, %s300
      %p307 = scmp.eq.s32.totalorder %s28, 3
      %p308 = por %p306, %p307
      %p309 = scmp.ne.s32.totalorder %s300, %s301
      %p310 = scmp.eq.s32.totalorder %s28, 0
      %p311 = por %p309, %p310
      %p312 = scmp.ne.s32.totalorder %s300, %s301
      %p313 = scmp.eq.s32.totalorder %s29, 3
      %p314 = por %p312, %p313
      %p316 = scmp.ne.s32.totalorder %s301, %s315
      %p317 = scmp.eq.s32.totalorder %s29, 0
      %p318 = por %p316, %p317
      %s320 = sadd.s32 %s319, 1
      %p323 = scmp.eq.s32.totalorder %s23, 3
      %p324 = scmp.ne.s32.totalorder %s319, %s321
      %p325 = scmp.eq.s32.totalorder %s23, 0
      %p326 = por %p324, %p325
      %p327 = scmp.ne.s32.totalorder %s319, %s321
      %p328 = scmp.eq.s32.totalorder %s28, 3
      %p329 = por %p327, %p328
      %p330 = scmp.ne.s32.totalorder %s321, %s322
      %p331 = scmp.eq.s32.totalorder %s28, 0
      %p332 = por %p330, %p331
      %p333 = scmp.ne.s32.totalorder %s321, %s322
      %p334 = scmp.eq.s32.totalorder %s29, 3
      %p335 = por %p333, %p334
      %p337 = scmp.ne.s32.totalorder %s322, %s336
      %p338 = scmp.eq.s32.totalorder %s29, 0
      %p339 = por %p337, %p338
      %s341 = sadd.s32 %s340, 1
      %p344 = scmp.eq.s32.totalorder %s23, 3
      %p345 = scmp.ne.s32.totalorder %s340, %s342
      %p346 = scmp.eq.s32.totalorder %s23, 0
      %p347 = por %p345, %p346
      %p348 = scmp.ne.s32.totalorder %s340, %s342
      %p349 = scmp.eq.s32.totalorder %s28, 3
      %p350 = por %p348, %p349
      %p351 = scmp.ne.s32.totalorder %s342, %s343
      %p352 = scmp.eq.s32.totalorder %s28, 0
      %p353 = por %p351, %p352
      %p354 = scmp.ne.s32.totalorder %s342, %s343
      %p355 = scmp.eq.s32.totalorder %s29, 3
      %p356 = por %p354, %p355
      %p358 = scmp.ne.s32.totalorder %s343, %s357
      %p359 = scmp.eq.s32.totalorder %s29, 0
      %p360 = por %p358, %p359
      %s362 = sadd.s32 %s361, 1
      %p365 = scmp.eq.s32.totalorder %s23, 3
      %p366 = scmp.ne.s32.totalorder %s361, %s363
      %p367 = scmp.eq.s32.totalorder %s23, 0
      %p368 = por %p366, %p367
      %p369 = scmp.ne.s32.totalorder %s361, %s363
      %p370 = scmp.eq.s32.totalorder %s28, 3
      %p371 = por %p369, %p370
      %p372 = scmp.ne.s32.totalorder %s363, %s364
      %p373 = scmp.eq.s32.totalorder %s28, 0
      %p374 = por %p372, %p373
      %p375 = scmp.ne.s32.totalorder %s363, %s364
      %p376 = scmp.eq.s32.totalorder %s29, 3
      %p377 = por %p375, %p376
      %p379 = scmp.ne.s32.totalorder %s364, %s378
      %p380 = scmp.eq.s32.totalorder %s29, 0
      %p381 = por %p379, %p380
      %s382 = ssub.s32 %s30, %s42
      %p383 = scmp.eq.s32.totalorder %s382, 0
      %s385 = sadd.s32 %s384, 1
      %s386 = scalar_select %p383, %s384, %s385
      %p389 = pneg %p383
      %p390 = scmp.eq.s32.totalorder %s23, 3
      %p391 = por %p389, %p390
      %p392 = scmp.ne.s32.totalorder %s384, %s387
      %p393 = scmp.eq.s32.totalorder %s23, 0
      %p394 = por %p392, %p393
      %p395 = scmp.ne.s32.totalorder %s384, %s387
      %p396 = scmp.eq.s32.totalorder %s28, 3
      %p397 = por %p395, %p396
      %p398 = scmp.ne.s32.totalorder %s387, %s388
      %p399 = scmp.eq.s32.totalorder %s28, 0
      %p400 = por %p398, %p399
      %p401 = scmp.ne.s32.totalorder %s387, %s388
      %p402 = scmp.eq.s32.totalorder %s29, 3
      %p403 = por %p401, %p402
      %p405 = scmp.ne.s32.totalorder %s388, %s404
      %p406 = scmp.eq.s32.totalorder %s29, 0
      %p407 = por %p405, %p406
      %p408 = scmp.le.s32.totalorder 1, %s23
      %p409 = scmp.lt.s32.totalorder %s23, 5
      %p410 = pnand %p408, %p409
      %p411 = pneg %p410
      // Predicated region
      $region9: #{forward.1} parent=5 // pred_check
        _
      $region10: #{forward.1} parent=5 // pred_check_branch
        %413 = sbr.rel (%p410) target = $region12
      $region11: #{forward.1} parent=5 // pred_region
        %s414 = ssub.s32 %s23, 1
        // Predicated region
        $region13: #{forward.1} parent=11 // pred_check
          %p415 = pneg %p108
        $region14: #{forward.1} parent=11 // pred_check_branch
          %417 = sbr.rel (%p415) target = $region16
        $region15: #{forward.1} parent=11 // pred_region
          _
        $region16: #{forward.1} parent=11 // pred_fallthru
          _
        // Predicated region
        $region17: #{forward.1} parent=11 // pred_check
          %p418 = pneg %p311
        $region18: #{forward.1} parent=11 // pred_check_branch
          %420 = sbr.rel (%p418) target = $region20
        $region19: #{forward.1} parent=11 // pred_region
          _
        $region20: #{forward.1} parent=11 // pred_fallthru
          _
        // Predicated region
        $region21: #{forward.1} parent=11 // pred_check
          %p421 = pneg %p332
        $region22: #{forward.1} parent=11 // pred_check_branch
          %423 = sbr.rel (%p421) target = $region24
        $region23: #{forward.1} parent=11 // pred_region
          _
        $region24: #{forward.1} parent=11 // pred_fallthru
          _
        // Predicated region
        $region25: #{forward.1} parent=11 // pred_check
          %p424 = pneg %p353
        $region26: #{forward.1} parent=11 // pred_check_branch
          %426 = sbr.rel (%p424) target = $region28
        $region27: #{forward.1} parent=11 // pred_region
          _
        $region28: #{forward.1} parent=11 // pred_fallthru
          _
        // Predicated region
        $region29: #{forward.1} parent=11 // pred_check
          %p427 = pneg %p374
        $region30: #{forward.1} parent=11 // pred_check_branch
          %429 = sbr.rel (%p427) target = $region32
        $region31: #{forward.1} parent=11 // pred_region
          _
        $region32: #{forward.1} parent=11 // pred_fallthru
          _
      $region12: #{forward.1} parent=5 // pred_fallthru
        _
      %p430 = scmp.lt.s32.totalorder %s23, 4
      // Predicated region
      $region33: #{forward.1} parent=5 // pred_check
        %p431 = pneg %p430
      $region34: #{forward.1} parent=5 // pred_check_branch
        %433 = sbr.rel (%p431) target = $region36
      $region35: #{forward.1} parent=5 // pred_region
        // Predicated region
        $region37: #{forward.1} parent=35 // pred_check
          %p434 = pneg %p55
        $region38: #{forward.1} parent=35 // pred_check_branch
          %436 = sbr.rel (%p434) target = $region40
        $region39: #{forward.1} parent=35 // pred_region
          %p437 = scmp.lt.s32.totalorder %s30, 1
          %s438 = scalar_select %p437, %s30, 1
          %s439 = smul.addr %s438, 8
          %s440 = scalar_lea.vmem %s0, %s439
        $region40: #{forward.1} parent=35 // pred_fallthru
          _
        // Predicated region
        $region41: #{forward.1} parent=35 // pred_check
          %p441 = pneg %p81
        $region42: #{forward.1} parent=35 // pred_check_branch
          %443 = sbr.rel (%p441) target = $region44
        $region43: #{forward.1} parent=35 // pred_region
          %p444 = scmp.lt.s32.totalorder %s30, 1
          %s445 = scalar_select %p444, %s30, 1
          %s446 = scalar_lea.vmem %s1, %s445
        $region44: #{forward.1} parent=35 // pred_fallthru
          _
        // Predicated region
        $region45: #{forward.1} parent=35 // pred_check
          %p447 = pneg %p128
        $region46: #{forward.1} parent=35 // pred_check_branch
          %449 = sbr.rel (%p447) target = $region48
        $region47: #{forward.1} parent=35 // pred_region
          %p450 = scmp.lt.s32.totalorder %s31, 1
          %s451 = scalar_select %p450, %s31, 1
          %s452 = smul.addr %s451, 24
          %s453 = smul.addr %s452, 4
          %s454 = scalar_lea.vmem %s3, %s453
        $region48: #{forward.1} parent=35 // pred_fallthru
          _
        // Predicated region
        $region49: #{forward.1} parent=35 // pred_check
          %p455 = pneg %p154
        $region50: #{forward.1} parent=35 // pred_check_branch
          %457 = sbr.rel (%p455) target = $region52
        $region51: #{forward.1} parent=35 // pred_region
          %p458 = scmp.lt.s32.totalorder %s31, 1
          %s459 = scalar_select %p458, %s31, 1
          %s460 = smul.addr %s459, 6
          %s461 = scalar_lea.vmem %s4, %s460
        $region52: #{forward.1} parent=35 // pred_fallthru
          _
        // Predicated region
        $region53: #{forward.1} parent=35 // pred_check
          %p462 = pneg %p180
        $region54: #{forward.1} parent=35 // pred_check_branch
          %464 = sbr.rel (%p462) target = $region56
        $region55: #{forward.1} parent=35 // pred_region
          %p465 = scmp.lt.s32.totalorder %s31, 1
          %s466 = scalar_select %p465, %s31, 1
          %s467 = smul.addr %s466, 4
          %s468 = smul.addr %s467, 4
          %s469 = scalar_lea.vmem %s5, %s468
        $region56: #{forward.1} parent=35 // pred_fallthru
          _
        // Predicated region
        $region57: #{forward.1} parent=35 // pred_check
          %p470 = pneg %p206
        $region58: #{forward.1} parent=35 // pred_check_branch
          %472 = sbr.rel (%p470) target = $region60
        $region59: #{forward.1} parent=35 // pred_region
          %p473 = scmp.lt.s32.totalorder %s31, 1
          %s474 = scalar_select %p473, %s31, 1
          %s475 = smul.addr %s474, 8
          %s476 = scalar_lea.vmem %s6, %s475
        $region60: #{forward.1} parent=35 // pred_fallthru
          _
        // Predicated region
        $region61: #{forward.1} parent=35 // pred_check
          %p477 = pneg %p232
        $region62: #{forward.1} parent=35 // pred_check_branch
          %479 = sbr.rel (%p477) target = $region64
        $region63: #{forward.1} parent=35 // pred_region
          %p480 = scmp.lt.s32.totalorder %s31, 1
          %s481 = scalar_select %p480, %s31, 1
          %s482 = smul.addr %s481, 4
          %s483 = smul.addr %s482, 4
          %s484 = scalar_lea.vmem %s7, %s483
        $region64: #{forward.1} parent=35 // pred_fallthru
          _
        // Predicated region
        $region65: #{forward.1} parent=35 // pred_check
          %p485 = pneg %p258
        $region66: #{forward.1} parent=35 // pred_check_branch
          %487 = sbr.rel (%p485) target = $region68
        $region67: #{forward.1} parent=35 // pred_region
          %p488 = scmp.lt.s32.totalorder %s31, 1
          %s489 = scalar_select %p488, %s31, 1
          %s490 = scalar_lea.vmem %s8, %s489
        $region68: #{forward.1} parent=35 // pred_fallthru
          _
        // Predicated region
        $region69: #{forward.1} parent=35 // pred_check
          %p491 = pneg %p284
        $region70: #{forward.1} parent=35 // pred_check_branch
          %493 = sbr.rel (%p491) target = $region72
        $region71: #{forward.1} parent=35 // pred_region
          %p494 = scmp.lt.s32.totalorder %s31, 1
          %s495 = scalar_select %p494, %s31, 1
          %s496 = smul.addr %s495, 8
          %s497 = smul.addr %s496, 4
          %s498 = scalar_lea.vmem %s9, %s497
        $region72: #{forward.1} parent=35 // pred_fallthru
          _
      $region36: #{forward.1} parent=5 // pred_fallthru
        _
      %p499 = scmp.le.s32.totalorder 1, %s23
      %p500 = scmp.lt.s32.totalorder %s23, 5
      %p501 = pnand %p499, %p500
      %p502 = pneg %p501
      // Predicated region
      $region73: #{forward.1} parent=5 // pred_check
        _
      $region74: #{forward.1} parent=5 // pred_check_branch
        %504 = sbr.rel (%p501) target = $region76
      $region75: #{forward.1} parent=5 // pred_region
        %s505 = ssub.s32 %s23, 1
        %p506 = scmp.lt.s32.totalorder %s32, 1
        %s507 = scalar_select %p506, %s32, 1
        %s508 = smul.addr %s507, 8
        %s509 = scalar_lea.vmem %s0, %s508
        %p510 = pneg %p61
        %p511 = pneg %p58
        %p512 = scmp.lt.s32.totalorder %s32, 1
        %s513 = scalar_select %p512, %s32, 1
        %s514 = scalar_lea.vmem %s1, %s513
        %p515 = pneg %p87
        %p516 = pneg %p84
        %p517 = pneg %p108
        %p518 = pneg %p105
        %p519 = scmp.lt.s32.totalorder %s33, 1
        %s520 = scalar_select %p519, %s33, 1
        %s521 = smul.addr %s520, 24
        %s522 = smul.addr %s521, 4
        %s523 = scalar_lea.vmem %s3, %s522
        %p524 = pneg %p134
        %p525 = pneg %p131
        %p526 = scmp.lt.s32.totalorder %s33, 1
        %s527 = scalar_select %p526, %s33, 1
        %s528 = smul.addr %s527, 6
        %s529 = scalar_lea.vmem %s4, %s528
        %p530 = pneg %p160
        %p531 = pneg %p157
        %p532 = scmp.lt.s32.totalorder %s33, 1
        %s533 = scalar_select %p532, %s33, 1
        %s534 = smul.addr %s533, 4
        %s535 = smul.addr %s534, 4
        %s536 = scalar_lea.vmem %s5, %s535
        %p537 = pneg %p186
        %p538 = pneg %p183
        %p539 = scmp.lt.s32.totalorder %s33, 1
        %s540 = scalar_select %p539, %s33, 1
        %s541 = smul.addr %s540, 8
        %s542 = scalar_lea.vmem %s6, %s541
        %p543 = pneg %p212
        %p544 = pneg %p209
        %p545 = scmp.lt.s32.totalorder %s33, 1
        %s546 = scalar_select %p545, %s33, 1
        %s547 = smul.addr %s546, 4
        %s548 = smul.addr %s547, 4
        %s549 = scalar_lea.vmem %s7, %s548
        %p550 = pneg %p238
        %p551 = pneg %p235
        %p552 = scmp.lt.s32.totalorder %s33, 1
        %s553 = scalar_select %p552, %s33, 1
        %s554 = scalar_lea.vmem %s8, %s553
        %p555 = pneg %p264
        %p556 = pneg %p261
        %p557 = scmp.lt.s32.totalorder %s33, 1
        %s558 = scalar_select %p557, %s33, 1
        %s559 = smul.addr %s558, 8
        %s560 = smul.addr %s559, 4
        %s561 = scalar_lea.vmem %s9, %s560
        %p562 = pneg %p290
        %p563 = pneg %p287
        %p564 = pneg %p311
        %p565 = pneg %p308
        %p566 = pneg %p332
        %p567 = pneg %p329
        %p568 = pneg %p353
        %p569 = pneg %p350
        %p570 = pneg %p374
        %p571 = pneg %p371
        %p572 = pneg %p400
        %p573 = pneg %p397
        %s574 = sand.u32 %s387, 1
        %s575 = scalar_lea.sflag [#allocation4], %s574
        %s576 = sand.u32 %s387, 1
        %s577 = scalar_lea.vmem [#allocation3], %s576
        %p578 = scmp.lt.s32.totalorder %s32, 1
        %s579 = scalar_select %p578, %s32, 1
        %s580 = smul.addr %s579, 8
        %s581 = scalar_lea.vmem %s0, %s580
        %p582 = scmp.lt.s32.totalorder %s32, 1
        %s583 = scalar_select %p582, %s32, 1
        %s584 = scalar_lea.vmem %s1, %s583
        %p585 = scmp.lt.s32.totalorder %s33, 1
        %s586 = scalar_select %p585, %s33, 1
        %s587 = smul.addr %s586, 24
        %s588 = smul.addr %s587, 4
        %s589 = scalar_lea.vmem %s3, %s588
        %p590 = scmp.lt.s32.totalorder %s33, 1
        %s591 = scalar_select %p590, %s33, 1
        %s592 = smul.addr %s591, 6
        %s593 = scalar_lea.vmem %s4, %s592
        %p594 = scmp.lt.s32.totalorder %s33, 1
        %s595 = scalar_select %p594, %s33, 1
        %s596 = smul.addr %s595, 4
        %s597 = smul.addr %s596, 4
        %s598 = scalar_lea.vmem %s5, %s597
        %p599 = scmp.lt.s32.totalorder %s33, 1
        %s600 = scalar_select %p599, %s33, 1
        %s601 = smul.addr %s600, 8
        %s602 = scalar_lea.vmem %s6, %s601
        %p603 = scmp.lt.s32.totalorder %s33, 1
        %s604 = scalar_select %p603, %s33, 1
        %s605 = smul.addr %s604, 4
        %s606 = smul.addr %s605, 4
        %s607 = scalar_lea.vmem %s7, %s606
        %p608 = scmp.lt.s32.totalorder %s33, 1
        %s609 = scalar_select %p608, %s33, 1
        %s610 = scalar_lea.vmem %s8, %s609
        %p611 = scmp.lt.s32.totalorder %s33, 1
        %s612 = scalar_select %p611, %s33, 1
        %s613 = smul.addr %s612, 8
        %s614 = smul.addr %s613, 4
        %s615 = scalar_lea.vmem %s9, %s614
        %p617 = scmp.eq.s32.totalorder %s33, 0
        // Predicated region
        $region77: #{forward.1} parent=75 // pred_check
          %p618 = pneg %p617
        $region78: #{forward.1} parent=75 // pred_check_branch
          %620 = sbr.rel (%p618) target = $region80
        $region79: #{forward.1} parent=75 // pred_region
          %v621 = vld [vmem:[%s581] sm:$0xff]
          %v622 = vld [vmem:[%s2] sm:$0x1]
          %v623 = vld [vmem:[%s2 + $0x1] sm:$0x1]
          %vm624 = vcmask 261120
          %v625 = vsel %vm624, %v621, 0.0
          %626 = vadd.xlane.f32.xlu0 %v625
          %v627 = vpop.xlane.xlu0 %626
          %v628 = vrcp.pop 32.0
          %v629 = vmul.f32 32.0, %v628
          %v630 = vsub.f32 1.0, %v629
          %v631 = vmul.f32 %v628, %v630
          %v632 = vadd.f32 %v628, %v631
          %vm633 = vweird.f32 %v628
          %v634 = vsel %vm633, %v628, %v632
          %v635 = vmul.f32 %v627, %v634
          %v636 = vsub.f32 %v621, %v635
          %v637 = vmul.f32 %v636, %v636
          %v638 = vsel %vm624, %v637, 0.0
          %639 = vadd.xlane.f32.xlu0 %v638
          %v640 = vpop.xlane.xlu0 %639
          %v641 = vmul.f32 %v640, %v634
          %v642 = vadd.f32 %v641, 1e-12
          %v643 = vrsqrt.pop %v642
          %v644 = vmul.f32 %v643, %v642
          %v645 = vmul.f32 %v644, %v643
          %v646 = vmul.f32 0.5, %v645
          %v647 = vsub.f32 1.5, %v646
          %v648 = vmul.f32 %v643, %v647
          %vm649 = vweird.f32 %v642
          %vm650 = vweird.f32 %v643
          %vm651 = vmor %vm649, %vm650
          %v652 = vsel %vm651, %v643, %v648
          %v653 = vmul.f32 %v636, %v652
          %v654 = vperm.slane %v622, 0
          %v655 = vmul.f32 %v653, %v654
          %v656 = vperm.slane %v623, 0
          %v657 = vadd.f32 %v655, %v656
          %658 = vst.msk [vmem:[#allocation2] sm:$0xff] %vm624, %v657
        $region80: #{forward.1} parent=75 // pred_fallthru
          _
        %v659 = vld [vmem:[#allocation2] sm:$0xff]
        %v660 = vpack.c.bf16 %v659, %v659
        %v661 = vld [vmem:[%s589] sm:$0xf]
        %v662 = vld [vmem:[%s589 + $0x4] sm:$0xf]
        %v663 = vld [vmem:[%s589 + $0x8] sm:$0xf]
        %v664 = vld [vmem:[%s589 + $0xc] sm:$0xf]
        %v665 = vld [vmem:[%s589 + $0x10] sm:$0xf]
        %v666 = vld [vmem:[%s589 + $0x14] sm:$0xf]
        %v667 = vld [vmem:[%s589 + $0x18] sm:$0xf]
        %v668 = vld [vmem:[%s589 + $0x1c] sm:$0xf]
        %v669 = vld [vmem:[%s589 + $0x20] sm:$0xf]
        %v670 = vld [vmem:[%s589 + $0x24] sm:$0xf]
        %v671 = vld [vmem:[%s589 + $0x28] sm:$0xf]
        %v672 = vld [vmem:[%s589 + $0x2c] sm:$0xf]
        %v673 = vld [vmem:[%s589 + $0x30] sm:$0xf]
        %v674 = vld [vmem:[%s589 + $0x34] sm:$0xf]
        %v675 = vld [vmem:[%s589 + $0x38] sm:$0xf]
        %v676 = vld [vmem:[%s589 + $0x3c] sm:$0xf]
        %v677 = vld [vmem:[%s589 + $0x40] sm:$0xf]
        %v678 = vld [vmem:[%s589 + $0x44] sm:$0xf]
        %v679 = vld [vmem:[%s589 + $0x48] sm:$0xf]
        %v680 = vld [vmem:[%s589 + $0x4c] sm:$0xf]
        %v681 = vld [vmem:[%s589 + $0x50] sm:$0xf]
        %v682 = vld [vmem:[%s589 + $0x54] sm:$0xf]
        %v683 = vld [vmem:[%s589 + $0x58] sm:$0xf]
        %v684 = vld [vmem:[%s589 + $0x5c] sm:$0xf]
        %v685 = vld [vmem:[%s593] sm:$0x1]
        %v686 = vld [vmem:[%s593 + $0x1] sm:$0x1]
        %v687 = vld [vmem:[%s593 + $0x2] sm:$0x1]
        %v688 = vld [vmem:[%s593 + $0x3] sm:$0x1]
        %v689 = vld [vmem:[%s593 + $0x4] sm:$0x1]
        %v690 = vld [vmem:[%s593 + $0x5] sm:$0x1]
        %v697 = vperm.slane %v685, 0
        %v698 = vperm.slane %v686, 0
        %v699 = vperm.slane %v687, 0
        %v700 = vperm.slane %v688, 0
        %v701 = vperm.slane %v689, 0
        %v702 = vperm.slane %v690, 0
        %v713 = vunpack.c.l.b16 %v661
        %v714 = vunpack.c.l.b16 %v662
        %v715 = vunpack.c.l.b16 %v663
        %v716 = vunpack.c.l.b16 %v664
        %v717 = vpack.c.b16 %v714, %v713
        %v718 = vpack.c.b16 %v716, %v715
        %vm721 = vcmask 261120
        %v723 = vsel %vm721, %v660, 0
        %725 = vmatpush.bf16.msra.mxu0 0
        %726 = vmatpush.bf16.msra.mxu0 0
        %727 = vmatpush.bf16.msra.mxu0 0
        %728 = vmatpush.bf16.msra.mxu0 0
        %729 = vmatpush.bf16.msra.mxu0 0
        %730 = vmatpush.bf16.msra.mxu0 0
        %731 = vmatpush.bf16.msra.mxu0 %v718
        %732 = vmatpush.bf16.msra.mxu0 %v717
        %733 = vmatmul.bf16.gmra.mxu0 %v723
        %v734 = vpop.f32.mrf.mxu0
        %v735 = vadd.f32 %v697, %v734
        %v736 = vpop.f32.mrf.mxu0
        %737 = vdwg.mxu0
        %v742 = vunpack.c.l.b16 %v665
        %v743 = vunpack.c.l.b16 %v666
        %v744 = vunpack.c.l.b16 %v667
        %v745 = vunpack.c.l.b16 %v668
        %v746 = vpack.c.b16 %v743, %v742
        %v747 = vpack.c.b16 %v745, %v744
        %750 = vmatpush.bf16.msra.mxu0 0
        %751 = vmatpush.bf16.msra.mxu0 0
        %752 = vmatpush.bf16.msra.mxu0 0
        %753 = vmatpush.bf16.msra.mxu0 0
        %754 = vmatpush.bf16.msra.mxu0 0
        %755 = vmatpush.bf16.msra.mxu0 0
        %756 = vmatpush.bf16.msra.mxu0 %v747
        %757 = vmatpush.bf16.msra.mxu0 %v746
        %758 = vmatmul.bf16.gmra.mxu0 %v723
        %v759 = vpop.f32.mrf.mxu0
        %v760 = vadd.f32 %v698, %v759
        %v761 = vpop.f32.mrf.mxu0
        %762 = vdwg.mxu0
        %v767 = vunpack.c.l.b16 %v669
        %v768 = vunpack.c.l.b16 %v670
        %v769 = vunpack.c.l.b16 %v671
        %v770 = vunpack.c.l.b16 %v672
        %v771 = vpack.c.b16 %v768, %v767
        %v772 = vpack.c.b16 %v770, %v769
        %775 = vmatpush.bf16.msra.mxu0 0
        %776 = vmatpush.bf16.msra.mxu0 0
        %777 = vmatpush.bf16.msra.mxu0 0
        %778 = vmatpush.bf16.msra.mxu0 0
        %779 = vmatpush.bf16.msra.mxu0 0
        %780 = vmatpush.bf16.msra.mxu0 0
        %781 = vmatpush.bf16.msra.mxu0 %v772
        %782 = vmatpush.bf16.msra.mxu0 %v771
        %783 = vmatmul.bf16.gmra.mxu0 %v723
        %v784 = vpop.f32.mrf.mxu0
        %v785 = vadd.f32 %v699, %v784
        %v786 = vpop.f32.mrf.mxu0
        %787 = vdwg.mxu0
        %v792 = vunpack.c.l.b16 %v673
        %v793 = vunpack.c.l.b16 %v674
        %v794 = vunpack.c.l.b16 %v675
        %v795 = vunpack.c.l.b16 %v676
        %v796 = vpack.c.b16 %v793, %v792
        %v797 = vpack.c.b16 %v795, %v794
        %800 = vmatpush.bf16.msra.mxu0 0
        %801 = vmatpush.bf16.msra.mxu0 0
        %802 = vmatpush.bf16.msra.mxu0 0
        %803 = vmatpush.bf16.msra.mxu0 0
        %804 = vmatpush.bf16.msra.mxu0 0
        %805 = vmatpush.bf16.msra.mxu0 0
        %806 = vmatpush.bf16.msra.mxu0 %v797
        %807 = vmatpush.bf16.msra.mxu0 %v796
        %808 = vmatmul.bf16.gmra.mxu0 %v723
        %v809 = vpop.f32.mrf.mxu0
        %v810 = vadd.f32 %v700, %v809
        %v811 = vpop.f32.mrf.mxu0
        %812 = vdwg.mxu0
        %v817 = vunpack.c.l.b16 %v677
        %v818 = vunpack.c.l.b16 %v678
        %v819 = vunpack.c.l.b16 %v679
        %v820 = vunpack.c.l.b16 %v680
        %v821 = vpack.c.b16 %v818, %v817
        %v822 = vpack.c.b16 %v820, %v819
        %825 = vmatpush.bf16.msra.mxu0 0
        %826 = vmatpush.bf16.msra.mxu0 0
        %827 = vmatpush.bf16.msra.mxu0 0
        %828 = vmatpush.bf16.msra.mxu0 0
        %829 = vmatpush.bf16.msra.mxu0 0
        %830 = vmatpush.bf16.msra.mxu0 0
        %831 = vmatpush.bf16.msra.mxu0 %v822
        %832 = vmatpush.bf16.msra.mxu0 %v821
        %833 = vmatmul.bf16.gmra.mxu0 %v723
        %v834 = vpop.f32.mrf.mxu0
        %v835 = vadd.f32 %v701, %v834
        %v836 = vpop.f32.mrf.mxu0
        %837 = vdwg.mxu0
        %v842 = vunpack.c.l.b16 %v681
        %v843 = vunpack.c.l.b16 %v682
        %v844 = vunpack.c.l.b16 %v683
        %v845 = vunpack.c.l.b16 %v684
        %v846 = vpack.c.b16 %v843, %v842
        %v847 = vpack.c.b16 %v845, %v844
        %850 = vmatpush.bf16.msra.mxu0 0
        %851 = vmatpush.bf16.msra.mxu0 0
        %852 = vmatpush.bf16.msra.mxu0 0
        %853 = vmatpush.bf16.msra.mxu0 0
        %854 = vmatpush.bf16.msra.mxu0 0
        %855 = vmatpush.bf16.msra.mxu0 0
        %856 = vmatpush.bf16.msra.mxu0 %v847
        %857 = vmatpush.bf16.msra.mxu0 %v846
        %858 = vmatmul.bf16.gmra.mxu0 %v723
        %v859 = vpop.f32.mrf.mxu0
        %v860 = vadd.f32 %v702, %v859
        %v861 = vpop.f32.mrf.mxu0
        %862 = vdwg.mxu0
        %v863 = vpack.c.bf16 %v735, %v735
        %v864 = vpack.c.bf16 %v760, %v760
        %v865 = vpack.c.bf16 %v785, %v785
        %v866 = vpack.c.bf16 %v810, %v810
        %v867 = vld [vmem:[%s584] sm:$0x1]
        %v869 = vperm.slane %v867, 0
        %vm871 = vcmask 130048
        %v873 = vsel %vm871, %v863, 0
        %v876 = vsel %vm871, %v865, 0
        %878 = vmatpush.bf16.xpose.msra.mxu0 0
        %879 = vmatpush.bf16.xpose.msra.mxu0 0
        %880 = vmatpush.bf16.xpose.msra.mxu0 0
        %881 = vmatpush.bf16.xpose.msra.mxu0 0
        %882 = vmatpush.bf16.xpose.msra.mxu0 0
        %883 = vmatpush.bf16.xpose.msra.mxu0 0
        %884 = vmatpush.bf16.xpose.msra.mxu0 0
        %885 = vmatpush.bf16.xpose.msra.mxu0 %v876
        %886 = vmatmul.bf16.gmra.mxu0 %v873
        %v887 = vpop.f32.mrf.mxu0
        %v888 = vadd.f32 %v869, %v887
        %v889 = vpop.f32.mrf.mxu0
        %890 = vdwg.mxu0
        %v892 = vsel %vm871, %v864, 0
        %v895 = vsel %vm871, %v866, 0
        %897 = vmatpush.bf16.xpose.msra.mxu0 0
        %898 = vmatpush.bf16.xpose.msra.mxu0 0
        %899 = vmatpush.bf16.xpose.msra.mxu0 0
        %900 = vmatpush.bf16.xpose.msra.mxu0 0
        %901 = vmatpush.bf16.xpose.msra.mxu0 0
        %902 = vmatpush.bf16.xpose.msra.mxu0 0
        %903 = vmatpush.bf16.xpose.msra.mxu0 0
        %904 = vmatpush.bf16.xpose.msra.mxu0 %v895
        %905 = vmatmul.bf16.gmra.mxu0 %v892
        %v906 = vpop.f32.mrf.mxu0
        %v907 = vadd.f32 %v869, %v906
        %v908 = vpop.f32.mrf.mxu0
        %909 = vdwg.mxu0
        %vm910 = vcmask 64512
        %v911 = vsel %vm910, %v888, -inf
        %912 = vmax.xlane.f32.xlu0 %v911
        %v913 = vpop.xlane.xlu0 %912
        %v914 = vsel %vm910, %v907, -inf
        %915 = vmax.xlane.f32.xlu0 %v914
        %v916 = vpop.xlane.xlu0 %915
        %v917 = vsub.f32 %v888, %v913
        %v918 = vsub.f32 %v907, %v916
        %v919 = vmul.f32 %v917, 1.442695
        %v920 = vpow.pop %v919
        %v921 = vmul.f32 %v918, 1.442695
        %v922 = vpow.pop %v921
        %v923 = vsel %vm910, %v920, 0.0
        %924 = vadd.xlane.f32.xlu0 %v923
        %v925 = vpop.xlane.xlu0 %924
        %v926 = vsel %vm910, %v922, 0.0
        %927 = vadd.xlane.f32.xlu0 %v926
        %v928 = vpop.xlane.xlu0 %927
        %v929 = vrcp.pop %v925
        %v930 = vrcp.pop %v928
        %v931 = vmul.f32 %v920, %v929
        %v932 = vmul.f32 %v922, %v930
        %v933 = vpack.c.bf16 %v931, %v931
        %v934 = vpack.c.bf16 %v932, %v932
        %v935 = vpack.c.bf16 %v835, %v835
        %v936 = vpack.c.bf16 %v860, %v860
        %v938 = vsel %vm910, %v933, 0
        %vm940 = vcmask 1043456
        %v942 = vsel %vm940, %v935, 0
        %944 = vmatpush.bf16.msra.mxu0 0
        %945 = vmatpush.bf16.msra.mxu0 0
        %946 = vmatpush.bf16.msra.mxu0 0
        %947 = vmatpush.bf16.msra.mxu0 0
        %948 = vmatpush.bf16.msra.mxu0 0
        %949 = vmatpush.bf16.msra.mxu0 0
        %950 = vmatpush.bf16.msra.mxu0 0
        %951 = vmatpush.bf16.msra.mxu0 %v942
        %952 = vmatmul.bf16.gmra.mxu0 %v938
        %v953 = vpop.f32.mrf.mxu0
        %v954 = vadd.f32 0.0, %v953
        %v955 = vpop.f32.mrf.mxu0
        %956 = vdwg.mxu0
        %v958 = vsel %vm910, %v934, 0
        %v961 = vsel %vm940, %v936, 0
        %963 = vmatpush.bf16.msra.mxu0 0
        %964 = vmatpush.bf16.msra.mxu0 0
        %965 = vmatpush.bf16.msra.mxu0 0
        %966 = vmatpush.bf16.msra.mxu0 0
        %967 = vmatpush.bf16.msra.mxu0 0
        %968 = vmatpush.bf16.msra.mxu0 0
        %969 = vmatpush.bf16.msra.mxu0 0
        %970 = vmatpush.bf16.msra.mxu0 %v961
        %971 = vmatmul.bf16.gmra.mxu0 %v958
        %v972 = vpop.f32.mrf.mxu0
        %v973 = vadd.f32 0.0, %v972
        %v974 = vpop.f32.mrf.mxu0
        %975 = vdwg.mxu0
        %v976 = vpack.c.bf16 %v954, %v954
        %v977 = vpack.c.bf16 %v973, %v973
        %v978 = vld [vmem:[%s598] sm:$0xf]
        %v979 = vld [vmem:[%s598 + $0x4] sm:$0xf]
        %v980 = vld [vmem:[%s598 + $0x8] sm:$0xf]
        %v981 = vld [vmem:[%s598 + $0xc] sm:$0xf]
        %v984 = vunpack.c.l.b16 %v978
        %v985 = vunpack.c.l.b16 %v979
        %v986 = vpack.c.b16 %v985, %v984
        %v989 = vsel %vm871, %v976, 0
        %991 = vmatpush.bf16.msra.mxu0 0
        %992 = vmatpush.bf16.msra.mxu0 0
        %993 = vmatpush.bf16.msra.mxu0 0
        %994 = vmatpush.bf16.msra.mxu0 0
        %995 = vmatpush.bf16.msra.mxu0 0
        %996 = vmatpush.bf16.msra.mxu0 0
        %997 = vmatpush.bf16.msra.mxu0 0
        %998 = vmatpush.bf16.msra.mxu0 %v986
        %999 = vmatmul.bf16.gmra.mxu0 %v989
        %v1000 = vpop.f32.mrf.mxu0
        %v1001 = vadd.f32 0.0, %v1000
        %v1002 = vpop.f32.mrf.mxu0
        %1003 = vdwg.mxu0
        %v1006 = vunpack.c.l.b16 %v980
        %v1007 = vunpack.c.l.b16 %v981
        %v1008 = vpack.c.b16 %v1007, %v1006
        %v1011 = vsel %vm871, %v977, 0
        %1013 = vmatpush.bf16.msra.mxu0 0
        %1014 = vmatpush.bf16.msra.mxu0 0
        %1015 = vmatpush.bf16.msra.mxu0 0
        %1016 = vmatpush.bf16.msra.mxu0 0
        %1017 = vmatpush.bf16.msra.mxu0 0
        %1018 = vmatpush.bf16.msra.mxu0 0
        %1019 = vmatpush.bf16.msra.mxu0 0
        %1020 = vmatpush.bf16.msra.mxu0 %v1008
        %1021 = vmatmul.bf16.gmra.mxu0 %v1011
        %v1022 = vpop.f32.mrf.mxu0
        %v1023 = vadd.f32 0.0, %v1022
        %v1024 = vpop.f32.mrf.mxu0
        %1025 = vdwg.mxu0
        %v1026 = vld [vmem:[%s602] sm:$0x3f]
        %v1027 = vsel %vm721, %v1001, 0.0
        %v1028 = vsel %vm721, %v1023, 0.0
        %v1029 = vadd.f32 %v1027, %v1028
        %v1030 = vperm.slane %v1026, 0
        %v1031 = vadd.f32 %v1029, %v1030
        %v1032 = vadd.f32 %v1031, %v659
        %v1033 = vsel %vm721, %v1032, 0.0
        %1034 = vadd.xlane.f32.xlu0 %v1033
        %v1035 = vpop.xlane.xlu0 %1034
        %v1036 = vrcp.pop 32.0
        %v1037 = vmul.f32 32.0, %v1036
        %v1038 = vsub.f32 1.0, %v1037
        %v1039 = vmul.f32 %v1036, %v1038
        %v1040 = vadd.f32 %v1036, %v1039
        %vm1041 = vweird.f32 %v1036
        %v1042 = vsel %vm1041, %v1036, %v1040
        %v1043 = vmul.f32 %v1035, %v1042
        %v1044 = vsub.f32 %v1032, %v1043
        %v1045 = vmul.f32 %v1044, %v1044
        %v1046 = vsel %vm721, %v1045, 0.0
        %1047 = vadd.xlane.f32.xlu0 %v1046
        %v1048 = vpop.xlane.xlu0 %1047
        %v1049 = vmul.f32 %v1048, %v1042
        %v1050 = vadd.f32 %v1049, 1e-12
        %v1051 = vrsqrt.pop %v1050
        %v1052 = vmul.f32 %v1051, %v1050
        %v1053 = vmul.f32 %v1052, %v1051
        %v1054 = vmul.f32 0.5, %v1053
        %v1055 = vsub.f32 1.5, %v1054
        %v1056 = vmul.f32 %v1051, %v1055
        %vm1057 = vweird.f32 %v1050
        %vm1058 = vweird.f32 %v1051
        %vm1059 = vmor %vm1057, %vm1058
        %v1060 = vsel %vm1059, %v1051, %v1056
        %v1061 = vmul.f32 %v1044, %v1060
        %v1062 = vperm.slane %v1026, 1
        %v1063 = vmul.f32 %v1061, %v1062
        %v1064 = vperm.slane %v1026, 2
        %v1065 = vadd.f32 %v1063, %v1064
        %v1066 = vpack.c.bf16 %v1065, %v1065
        %v1067 = vld [vmem:[%s607] sm:$0xf]
        %v1068 = vld [vmem:[%s607 + $0x4] sm:$0xf]
        %v1069 = vld [vmem:[%s607 + $0x8] sm:$0xf]
        %v1070 = vld [vmem:[%s607 + $0xc] sm:$0xf]
        %v1071 = vld [vmem:[%s610] sm:$0x1]
        %v1073 = vperm.slane %v1071, 0
        %v1079 = vunpack.c.l.b16 %v1067
        %v1080 = vunpack.c.l.b16 %v1068
        %v1081 = vunpack.c.l.b16 %v1069
        %v1082 = vunpack.c.l.b16 %v1070
        %v1083 = vpack.c.b16 %v1080, %v1079
        %v1084 = vpack.c.b16 %v1082, %v1081
        %v1088 = vsel %vm721, %v1066, 0
        %1090 = vmatpush.bf16.msra.mxu0 0
        %1091 = vmatpush.bf16.msra.mxu0 0
        %1092 = vmatpush.bf16.msra.mxu0 0
        %1093 = vmatpush.bf16.msra.mxu0 0
        %1094 = vmatpush.bf16.msra.mxu0 0
        %1095 = vmatpush.bf16.msra.mxu0 0
        %1096 = vmatpush.bf16.msra.mxu0 %v1084
        %1097 = vmatpush.bf16.msra.mxu0 %v1083
        %1098 = vmatmul.bf16.gmra.mxu0 %v1088
        %v1099 = vpop.f32.mrf.mxu0
        %v1100 = vadd.f32 %v1073, %v1099
        %v1101 = vpop.f32.mrf.mxu0
        %1102 = vdwg.mxu0
        %v1103 = vmul.f32 %v1100, %v1100
        %v1104 = vmul.f32 %v1100, %v1103
        %v1105 = vmul.f32 %v1104, 0.044715
        %v1106 = vadd.f32 %v1100, %v1105
        %v1107 = vmul.f32 %v1106, 0.7978846
        %v1108 = vtanh.pop %v1107
        %v1109 = vadd.f32 %v1108, 1.0
        %v1110 = vmul.f32 %v1109, 0.5
        %v1111 = vmul.f32 %v1100, %v1110
        %v1112 = vpack.c.bf16 %v1111, %v1111
        %v1113 = vld [vmem:[%s615] sm:$0xf]
        %v1114 = vld [vmem:[%s615 + $0x4] sm:$0xf]
        %v1115 = vld [vmem:[%s615 + $0x8] sm:$0xf]
        %v1116 = vld [vmem:[%s615 + $0xc] sm:$0xf]
        %v1117 = vld [vmem:[%s615 + $0x10] sm:$0xf]
        %v1118 = vld [vmem:[%s615 + $0x14] sm:$0xf]
        %v1119 = vld [vmem:[%s615 + $0x18] sm:$0xf]
        %v1120 = vld [vmem:[%s615 + $0x1c] sm:$0xf]
        %v1121 = vperm.slane %v1026, 3
        %v1130 = vunpack.c.l.b16 %v1113
        %v1131 = vunpack.c.l.b16 %v1114
        %v1132 = vunpack.c.l.b16 %v1115
        %v1133 = vunpack.c.l.b16 %v1116
        %v1134 = vunpack.c.l.b16 %v1117
        %v1135 = vunpack.c.l.b16 %v1118
        %v1136 = vunpack.c.l.b16 %v1119
        %v1137 = vunpack.c.l.b16 %v1120
        %v1138 = vpack.c.b16 %v1131, %v1130
        %v1139 = vpack.c.b16 %v1133, %v1132
        %v1140 = vpack.c.b16 %v1135, %v1134
        %v1141 = vpack.c.b16 %v1137, %v1136
        %vm1146 = vcmask 523264
        %v1148 = vsel %vm1146, %v1112, 0
        %1150 = vmatpush.bf16.msra.mxu0 0
        %1151 = vmatpush.bf16.msra.mxu0 0
        %1152 = vmatpush.bf16.msra.mxu0 0
        %1153 = vmatpush.bf16.msra.mxu0 0
        %1154 = vmatpush.bf16.msra.mxu0 %v1141
        %1155 = vmatpush.bf16.msra.mxu0 %v1140
        %1156 = vmatpush.bf16.msra.mxu0 %v1139
        %1157 = vmatpush.bf16.msra.mxu0 %v1138
        %1158 = vmatmul.bf16.gmra.mxu0 %v1148
        %v1159 = vpop.f32.mrf.mxu0
        %v1160 = vadd.f32 %v1121, %v1159
        %v1161 = vpop.f32.mrf.mxu0
        %1162 = vdwg.mxu0
        %v1163 = vadd.f32 %v1160, %v1065
        %v1164 = vsel %vm721, %v1163, 0.0
        %1165 = vadd.xlane.f32.xlu0 %v1164
        %v1166 = vpop.xlane.xlu0 %1165
        %v1167 = vmul.f32 %v1166, %v1042
        %v1168 = vsub.f32 %v1163, %v1167
        %v1169 = vmul.f32 %v1168, %v1168
        %v1170 = vsel %vm721, %v1169, 0.0
        %1171 = vadd.xlane.f32.xlu0 %v1170
        %v1172 = vpop.xlane.xlu0 %1171
        %v1173 = vmul.f32 %v1172, %v1042
        %v1174 = vadd.f32 %v1173, 1e-12
        %v1175 = vrsqrt.pop %v1174
        %v1176 = vmul.f32 %v1175, %v1174
        %v1177 = vmul.f32 %v1176, %v1175
        %v1178 = vmul.f32 0.5, %v1177
        %v1179 = vsub.f32 1.5, %v1178
        %v1180 = vmul.f32 %v1175, %v1179
        %vm1181 = vweird.f32 %v1174
        %vm1182 = vweird.f32 %v1175
        %vm1183 = vmor %vm1181, %vm1182
        %v1184 = vsel %vm1183, %v1175, %v1180
        %v1185 = vmul.f32 %v1168, %v1184
        %v1186 = vperm.slane %v1026, 4
        %v1187 = vmul.f32 %v1185, %v1186
        %v1188 = vperm.slane %v1026, 5
        %v1189 = vadd.f32 %v1187, %v1188
        %1190 = vst.msk [vmem:[#allocation2] sm:$0xff] %vm721, %v1189
        %p1191 = scmp.eq.s32.totalorder %s33, 1
        // Predicated region
        $region81: #{forward.1} parent=75 // pred_check
          %p1192 = pneg %p1191
        $region82: #{forward.1} parent=75 // pred_check_branch
          %1194 = sbr.rel (%p1192) target = $region84
        $region83: #{forward.1} parent=75 // pred_region
          %v1195 = vpack.c.bf16 %v1189, %v1189
          %v1196 = vld [vmem:[%s10] sm:$0xf]
          %v1197 = vld [vmem:[%s10 + $0x4] sm:$0xf]
          %v1198 = vld [vmem:[%s10 + $0x8] sm:$0xf]
          %v1199 = vld [vmem:[%s10 + $0xc] sm:$0xf]
          %v1200 = vld [vmem:[%s11] sm:$0x1]
          %v1205 = vunpack.c.l.b16 %v1196
          %v1206 = vunpack.c.l.b16 %v1197
          %v1207 = vunpack.c.l.b16 %v1198
          %v1208 = vunpack.c.l.b16 %v1199
          %v1209 = vpack.c.b16 %v1206, %v1205
          %v1210 = vpack.c.b16 %v1208, %v1207
          %v1214 = vsel %vm721, %v1195, 0
          %1216 = vmatpush.bf16.msra.mxu0 0
          %1217 = vmatpush.bf16.msra.mxu0 0
          %1218 = vmatpush.bf16.msra.mxu0 0
          %1219 = vmatpush.bf16.msra.mxu0 0
          %1220 = vmatpush.bf16.msra.mxu0 0
          %1221 = vmatpush.bf16.msra.mxu0 0
          %1222 = vmatpush.bf16.msra.mxu0 %v1210
          %1223 = vmatpush.bf16.msra.mxu0 %v1209
          %1224 = vmatmul.bf16.gmra.mxu0 %v1214
          %v1225 = vpop.f32.mrf.mxu0
          %v1226 = vadd.f32 %v1200, %v1225
          %v1227 = vpop.f32.mrf.mxu0
          %1228 = vdwg.mxu0
          %v1229 = vmax.f32 %v1226, 0.0
          %v1230 = vpack.c.bf16 %v1229, %v1229
          %v1231 = vld [vmem:[%s12] sm:$0xf]
          %v1232 = vld [vmem:[%s12 + $0x4] sm:$0xf]
          %v1233 = vld [vmem:[%s12 + $0x8] sm:$0xf]
          %v1234 = vld [vmem:[%s12 + $0xc] sm:$0xf]
          %v1235 = vld [vmem:[%s12 + $0x10] sm:$0xf]
          %v1236 = vld [vmem:[%s12 + $0x14] sm:$0xf]
          %v1237 = vld [vmem:[%s12 + $0x18] sm:$0xf]
          %v1238 = vld [vmem:[%s12 + $0x1c] sm:$0xf]
          %v1239 = vld [vmem:[%s12 + $0x20] sm:$0xf]
          %v1240 = vld [vmem:[%s12 + $0x24] sm:$0xf]
          %v1241 = vld [vmem:[%s12 + $0x28] sm:$0xf]
          %v1242 = vld [vmem:[%s12 + $0x2c] sm:$0xf]
          %v1243 = vld [vmem:[%s12 + $0x30] sm:$0xf]
          %v1244 = vld [vmem:[%s12 + $0x34] sm:$0xf]
          %v1245 = vld [vmem:[%s12 + $0x38] sm:$0xf]
          %v1246 = vld [vmem:[%s12 + $0x3c] sm:$0xf]
          %v1247 = vld [vmem:[%s13] sm:$0x1]
          %v1264 = vunpack.c.l.b16 %v1231
          %v1265 = vunpack.c.l.b16 %v1232
          %v1266 = vunpack.c.l.b16 %v1233
          %v1267 = vunpack.c.l.b16 %v1234
          %v1268 = vunpack.c.l.b16 %v1235
          %v1269 = vunpack.c.l.b16 %v1236
          %v1270 = vunpack.c.l.b16 %v1237
          %v1271 = vunpack.c.l.b16 %v1238
          %v1272 = vunpack.c.l.b16 %v1239
          %v1273 = vunpack.c.l.b16 %v1240
          %v1274 = vunpack.c.l.b16 %v1241
          %v1275 = vunpack.c.l.b16 %v1242
          %v1276 = vunpack.c.l.b16 %v1243
          %v1277 = vunpack.c.l.b16 %v1244
          %v1278 = vunpack.c.l.b16 %v1245
          %v1279 = vunpack.c.l.b16 %v1246
          %v1280 = vpack.c.b16 %v1265, %v1264
          %v1281 = vpack.c.b16 %v1267, %v1266
          %v1282 = vpack.c.b16 %v1269, %v1268
          %v1283 = vpack.c.b16 %v1271, %v1270
          %v1284 = vpack.c.b16 %v1273, %v1272
          %v1285 = vpack.c.b16 %v1275, %v1274
          %v1286 = vpack.c.b16 %v1277, %v1276
          %v1287 = vpack.c.b16 %v1279, %v1278
          %1296 = vmatpush.bf16.msra.mxu0 %v1287
          %1297 = vmatpush.bf16.msra.mxu0 %v1286
          %1298 = vmatpush.bf16.msra.mxu0 %v1285
          %1299 = vmatpush.bf16.msra.mxu0 %v1284
          %1300 = vmatpush.bf16.msra.mxu0 %v1283
          %1301 = vmatpush.bf16.msra.mxu0 %v1282
          %1302 = vmatpush.bf16.msra.mxu0 %v1281
          %1303 = vmatpush.bf16.msra.mxu0 %v1280
          %1304 = vmatmul.bf16.gmra.mxu0 %v1230
          %v1305 = vpop.f32.mrf.mxu0
          %v1306 = vadd.f32 %v1247, %v1305
          %v1307 = vpop.f32.mrf.mxu0
          %1308 = vdwg.mxu0
          %1309 = vst [vmem:[%s577] sm:$0x1] %v1306
        $region84: #{forward.1} parent=75 // pred_fallthru
          _
        %s1310 = sand.u32 %s387, 1
        %s1311 = scalar_lea.sflag [#allocation4], %s1310
        %s1312 = sand.u32 %s387, 1
        %s1313 = scalar_lea.vmem [#allocation3], %s1312
        // Predicated region
        $region85: #{forward.1} parent=75 // pred_check
          %p1314 = pneg %p397
        $region86: #{forward.1} parent=75 // pred_check_branch
          %1316 = sbr.rel (%p1314) target = $region88
        $region87: #{forward.1} parent=75 // pred_region
          %1318 = vsyncadd %s1311, 0
          %s1319 = scalar_lea.hbm %s14, %s32
          %s1321 = sshll.u32 %s1313, 4
          %s1322 = int_to_ptr.vmem [resolvable:$true] %s1321
          %s1323 = sshll.u32 %s1319, 4
          %s1324 = int_to_ptr.hbm [resolvable:$true] %s1323
          %1326 = dma.vmem_to_hbm [thread:$0]  %s1322, 16, %s1324, %s1311
        $region88: #{forward.1} parent=75 // pred_fallthru
          _
      $region76: #{forward.1} parent=5 // pred_fallthru
        _
      %p1327 = scmp.le.s32.totalorder 2, %s23
      // Predicated region
      $region89: #{forward.1} parent=5 // pred_check
        %p1328 = pneg %p1327
      $region90: #{forward.1} parent=5 // pred_check_branch
        %1330 = sbr.rel (%p1328) target = $region92
      $region91: #{forward.1} parent=5 // pred_region
        %s1331 = ssub.s32 %s23, 2
        // Predicated region
        $region93: #{forward.1} parent=91 // pred_check
          %p1332 = pneg %p403
        $region94: #{forward.1} parent=91 // pred_check_branch
          %1334 = sbr.rel (%p1332) target = $region96
        $region95: #{forward.1} parent=91 // pred_region
          %s1335 = sand.u32 %s388, 1
          %s1336 = scalar_lea.sflag [#allocation4], %s1335
          %s1337 = sand.u32 %s388, 1
          %s1338 = scalar_lea.vmem [#allocation3], %s1337
          %1340 = dma.done %s1336, 16
        $region96: #{forward.1} parent=91 // pred_fallthru
          _
      $region92: #{forward.1} parent=5 // pred_fallthru
        _
    $region6: #{forward.1} parent=1 // loop_footer
      %s27 = sadd.s32 1, %s23
    $region7: #{forward.1} parent=1 // loop_footer_branch
      %22 = sbr.rel target = $region3
    $region8: #{forward.1} parent=1 // loop_exit
      _
    %1341 = vsyncpa [#allocation4], 1
    %s1342 = scalar_lea.sflag [#allocation4], 1
    %1343 = vsyncpa %s1342, 1

</llo_original>
